<compile_context>
chip_gen: v7x
topology: tpu7x:2x2x1
jax: 0.10.0
libtpu: 0.0.40
codegen_flags: <defaults>
</compile_context>

<pallas_src>
import math
import functools

import jax
import jax.numpy as jnp
from jax import lax
from jax.experimental import pallas as pl
from jax.experimental.pallas import tpu as pltpu


# ---------------- config (mirrors the PyTorch `config` object) -------------
class config:
    num_head = 4
    dim_model = 32
    dim_k = 8
    dim_v = 8


# ---------------------------- Pallas kernel --------------------------------
def _mha_kernel(x_ref, kv_ref, wq_ref, wkv_ref, wl_ref, b_ref, o_ref, *,
                need_mask, num_head, dim_k, dim_v):
    """Grid = (B,).  One grid step = full multi-head attention for one batch."""
    x = x_ref[0]          # (S_q, dim_model)   query source
    kv = kv_ref[0]        # (S_kv, dim_model)  key/value source
    s_q = x.shape[0]
    s_kv = kv.shape[0]

    # Fused projections (2 MXU matmuls total; 1/sqrt(dim_k) folded into Wq).
    q_all = jnp.dot(x, wq_ref[...], preferred_element_type=jnp.float32)    # (S_q, H*dk)
    kv_all = jnp.dot(kv, wkv_ref[...], preferred_element_type=jnp.float32)  # (S_kv, H*(dk+dv))

    if need_mask:
        # NOTE: faithful reproduction of the PyTorch code, which ADDS a
        # strictly-upper-triangular matrix of ONES (not -inf) to the scores.
        row = lax.broadcasted_iota(jnp.int32, (s_q, s_kv), 0)
        col = lax.broadcasted_iota(jnp.int32, (s_q, s_kv), 1)
        mask_add = (col > row).astype(jnp.float32)          # hoisted out of head loop

    k_base = num_head * dim_k
    head_outs = []
    for h in range(num_head):                               # static unroll, H=4
        q_h = q_all[:, h * dim_k:(h + 1) * dim_k]           # (S_q, dk)
        k_h = kv_all[:, h * dim_k:(h + 1) * dim_k]          # (S_kv, dk)
        v_h = kv_all[:, k_base + h * dim_v:k_base + (h + 1) * dim_v]  # (S_kv, dv)

        # scores[q, k] = sum_d q_h[q, d] * k_h[k, d]  (no explicit transpose)
        scores = lax.dot_general(q_h, k_h, (((1,), (1,)), ((), ())),
                                 preferred_element_type=jnp.float32)
        if need_mask:
            scores = scores + mask_add

        # Softmax over last dim (f32 VPU math; reciprocal on the EUP).
        m = jnp.max(scores, axis=-1, keepdims=True)
        e = jnp.exp(scores - m)
        denom = jnp.sum(e, axis=-1, keepdims=True)
        p = e * pl.reciprocal(denom, approx=True)

        head_outs.append(jnp.dot(p, v_h, preferred_element_type=jnp.float32))

    # Concat over heads then single output projection + bias, single store.
    concat = jnp.concatenate(head_outs, axis=1)              # (S_q, H*dv)
    out = jnp.dot(concat, wl_ref[...],
                  preferred_element_type=jnp.float32) + b_ref[...]
    o_ref[0] = out.astype(o_ref.dtype)


# ------------------------------ wrapper -------------------------------------
def multi_head_forward(params, prev_seq, mode=0, encoder_out=None):
    """Equivalent of Multi_head(mode).forward(prev_seq, encoder_out)."""
    need_mask = (mode == 1)
    if mode == 2:
        if encoder_out is None:
            raise ValueError("encoder_out required for mode 2")
        kv_src = encoder_out
    else:
        kv_src = prev_seq

    Wq, Wk, Wv, Wlin, b_lin = (params["Wq"], params["Wk"], params["Wv"],
                               params["Wlin"], params["b_lin"])

    B, S_q, dm = prev_seq.shape
    _, S_kv, _ = kv_src.shape
    H, _, dk = Wq.shape
    dv = Wv.shape[2]

    # Head-concatenated projection weights (all precomputed once in the wrapper).
    #   Wq_all[:, h*dk:(h+1)*dk] == Wq[h] / sqrt(dk)   (scale folded in)
    #   Wkv_all = [Wk_all | Wv_all]                    (K and V fused)
    Wq_all = jnp.transpose(Wq, (1, 0, 2)).reshape(dm, H * dk) * (1.0 / math.sqrt(dk))
    Wk_all = jnp.transpose(Wk, (1, 0, 2)).reshape(dm, H * dk)
    Wv_all = jnp.transpose(Wv, (1, 0, 2)).reshape(dm, H * dv)
    Wkv_all = jnp.concatenate([Wk_all, Wv_all], axis=1)       # (dm, H*(dk+dv))

    # nn.Linear(num_head*dim_v, dim_model) computes x @ W.T + b.
    WlT = Wlin.T                                              # (H*dv, dm)
    bias2d = b_lin.reshape(1, dm)

    kernel = functools.partial(_mha_kernel, need_mask=need_mask,
                               num_head=H, dim_k=dk, dim_v=dv)

    return pl.pallas_call(
        kernel,
        out_shape=jax.ShapeDtypeStruct((B, S_q, dm), prev_seq.dtype),
        grid_spec=pltpu.PrefetchScalarGridSpec(
            num_scalar_prefetch=0,
            grid=(B,),
            in_specs=[
                pl.BlockSpec((1, S_q, dm), lambda b: (b, 0, 0)),    # query src
                pl.BlockSpec((1, S_kv, dm), lambda b: (b, 0, 0)),   # kv src
                # Weights: grid-invariant index_maps -> stay VMEM resident.
                pl.BlockSpec((dm, H * dk), lambda b: (0, 0)),       # Wq (scaled)
                pl.BlockSpec((dm, H * (dk + dv)), lambda b: (0, 0)),  # Wk|Wv fused
                pl.BlockSpec((H * dv, dm), lambda b: (0, 0)),       # Wlin.T
                pl.BlockSpec((1, dm), lambda b: (0, 0)),            # bias
            ],
            out_specs=pl.BlockSpec((1, S_q, dm), lambda b: (b, 0, 0)),
        ),
        compiler_params=pltpu.CompilerParams(
            dimension_semantics=("parallel",)),
    )(prev_seq, kv_src, Wq_all, Wkv_all, WlT, bias2d)


# ------------------------ deterministic param init --------------------------
def init_params(key):
    H, dm, dk, dv = config.num_head, config.dim_model, config.dim_k, config.dim_v
    kq, kk, kv, kl, kb = jax.random.split(key, 5)

    def xavier_uniform(k, shape, fan_in, fan_out):
        bound = math.sqrt(6.0 / (fan_in + fan_out))
        return jax.random.uniform(k, shape, jnp.float32, -bound, bound)

    return {
        "Wq": xavier_uniform(kq, (H, dm, dk), dm, dk),
        "Wk": xavier_uniform(kk, (H, dm, dk), dm, dk),
        "Wv": xavier_uniform(kv, (H, dm, dv), dm, dv),
        "Wlin": xavier_uniform(kl, (dm, H * dv), H * dv, dm),   # [out, in]
        "b_lin": jax.random.uniform(kb, (dm,), jnp.float32,
                                    -1.0 / math.sqrt(H * dv),
                                    1.0 / math.sqrt(H * dv)),
    }


# --------------------------- pure-JAX reference ------------------------------
def reference_forward(params, prev_seq, mode=0, encoder_out=None):
    kv_src = encoder_out if mode == 2 else prev_seq
    Wq, Wk, Wv, Wlin, b = (params["Wq"], params["Wk"], params["Wv"],
                           params["Wlin"], params["b_lin"])
    outs = []
    B = prev_seq.shape[0]
    H = Wq.shape[0]
    for j in range(B):
        heads = []
        for i in range(H):
            q = prev_seq[j] @ Wq[i]
            k = kv_src[j] @ Wk[i]
            v = kv_src[j] @ Wv[i]
            s = q @ k.T / math.sqrt(config.dim_k)
            if mode == 1:
                S = s.shape[0]
                s = s + jnp.triu(jnp.ones((S, S), s.dtype), k=1)
            p = jax.nn.softmax(s, axis=-1)
            heads.append(p @ v)
        concat = jnp.concatenate(heads, axis=1)
        outs.append(concat @ Wlin.T + b)
    return jnp.stack(outs, axis=0)


# --------------------------------- main --------------------------------------
if __name__ == "__main__":
    key = jax.random.PRNGKey(0)
    kp, kx, ke = jax.random.split(key, 3)

    B, S, S_enc = 2, 8, 16
    params = init_params(kp)
    prev_seq = jax.random.normal(kx, (B, S, config.dim_model), jnp.float32)
    encoder_out = jax.random.normal(ke, (B, S_enc, config.dim_model), jnp.float32)

    # Tolerance slightly loosened vs. exact f32 because the softmax denominator
    # uses the EUP approximate reciprocal (per perf review).
    for mode, enc in ((0, None), (1, None), (2, encoder_out)):
        out = multi_head_forward(params, prev_seq, mode=mode, encoder_out=enc)
        out = jax.block_until_ready(out)
        ref = reference_forward(params, prev_seq, mode=mode, encoder_out=enc)
        assert out.shape == ref.shape, f"shape mismatch mode={mode}"
        assert jnp.allclose(out, ref, rtol=1e-2, atol=1e-2), \
            f"mismatch vs reference (mode={mode})"

    print("KERNEL_OK")
</pallas_src>

<mosaic_0001>
module attributes {stable_mosaic.version = 11 : i64} {
  func.func @_mha_kernel(%arg0: i32, %arg1: memref<1x8x32xf32, #tpu.memory_space<vmem>>, %arg2: memref<1x8x32xf32, #tpu.memory_space<vmem>>, %arg3: memref<32x32xf32, #tpu.memory_space<vmem>>, %arg4: memref<32x64xf32, #tpu.memory_space<vmem>>, %arg5: memref<32x32xf32, #tpu.memory_space<vmem>>, %arg6: memref<1x32xf32, #tpu.memory_space<vmem>>, %arg7: memref<1x8x32xf32, #tpu.memory_space<vmem>>) attributes {dimension_semantics = [#tpu.dimension_semantics<parallel>], iteration_bounds = array<i64: 2>, scalar_prefetch = 0 : i64, scratch_operands = 0 : i64, tpu.core_type = #tpu.core_type<tc>, window_params = [{transform_indices = @transform_0, window_bounds = array<i64: 1, 8, 32>}, {transform_indices = @transform_1, window_bounds = array<i64: 1, 8, 32>}, {pipeline_mode = #tpu.pipeline_mode<synchronous>, transform_indices = @transform_2, window_bounds = array<i64: 32, 32>}, {pipeline_mode = #tpu.pipeline_mode<synchronous>, transform_indices = @transform_3, window_bounds = array<i64: 32, 64>}, {pipeline_mode = #tpu.pipeline_mode<synchronous>, transform_indices = @transform_4, window_bounds = array<i64: 32, 32>}, {pipeline_mode = #tpu.pipeline_mode<synchronous>, transform_indices = @transform_5, window_bounds = array<i64: 1, 32>}, {transform_indices = @transform_6, window_bounds = array<i64: 1, 8, 32>}]} {
    %c0 = arith.constant 0 : index
    %c0_0 = arith.constant 0 : index
    %c0_1 = arith.constant 0 : index
    %0 = vector.load %arg1[%c0, %c0_0, %c0_1] : memref<1x8x32xf32, #tpu.memory_space<vmem>>, vector<1x8x32xf32>
    %1 = vector.shape_cast %0 : vector<1x8x32xf32> to vector<8x32xf32>
    %c0_2 = arith.constant 0 : index
    %c0_3 = arith.constant 0 : index
    %c0_4 = arith.constant 0 : index
    %2 = vector.load %arg2[%c0_2, %c0_3, %c0_4] : memref<1x8x32xf32, #tpu.memory_space<vmem>>, vector<1x8x32xf32>
    %3 = vector.shape_cast %2 : vector<1x8x32xf32> to vector<8x32xf32>
    %c0_5 = arith.constant 0 : index
    %c0_6 = arith.constant 0 : index
    %4 = vector.load %arg3[%c0_5, %c0_6] : memref<32x32xf32, #tpu.memory_space<vmem>>, vector<32x32xf32>
    %cst = arith.constant dense<0.000000e+00> : vector<8x32xf32>
    %5 = tpu.matmul %1, %4, %cst {dimension_numbers = #tpu.dot_dimension_numbers<[1], [0], [0], [1], [0, 0, 1, 1], [], []>} : vector<8x32xf32>, vector<32x32xf32>, vector<8x32xf32> -> vector<8x32xf32>
    %c0_7 = arith.constant 0 : index
    %c0_8 = arith.constant 0 : index
    %6 = vector.load %arg4[%c0_7, %c0_8] : memref<32x64xf32, #tpu.memory_space<vmem>>, vector<32x64xf32>
    %cst_9 = arith.constant dense<0.000000e+00> : vector<8x64xf32>
    %7 = tpu.matmul %3, %6, %cst_9 {dimension_numbers = #tpu.dot_dimension_numbers<[1], [0], [0], [1], [0, 0, 1, 1], [], []>} : vector<8x32xf32>, vector<32x64xf32>, vector<8x64xf32> -> vector<8x64xf32>
    %8 = vector.extract_strided_slice %5 {offsets = [0, 0], sizes = [8, 8], strides = [1, 1]} : vector<8x32xf32> to vector<8x8xf32>
    %9 = vector.extract_strided_slice %7 {offsets = [0, 0], sizes = [8, 8], strides = [1, 1]} : vector<8x64xf32> to vector<8x8xf32>
    %10 = vector.extract_strided_slice %7 {offsets = [0, 32], sizes = [8, 8], strides = [1, 1]} : vector<8x64xf32> to vector<8x8xf32>
    %cst_10 = arith.constant dense<0.000000e+00> : vector<8x8xf32>
    %11 = tpu.matmul %8, %9, %cst_10 {dimension_numbers = #tpu.dot_dimension_numbers<[1], [1], [0], [0], [0, 0, 1, 0], [], []>} : vector<8x8xf32>, vector<8x8xf32>, vector<8x8xf32> -> vector<8x8xf32>
    %cst_11 = arith.constant dense<0xFF800000> : vector<8xf32>
    %12 = vector.multi_reduction <maximumf>, %11, %cst_11 [1] : vector<8x8xf32> to vector<8xf32>
    %13 = vector.shape_cast %12 : vector<8xf32> to vector<8x1xf32>
    %14 = vector.broadcast %13 : vector<8x1xf32> to vector<8x8xf32>
    %15 = arith.subf %11, %14 : vector<8x8xf32>
    %16 = math.exp %15 : vector<8x8xf32>
    %cst_12 = arith.constant dense<0.000000e+00> : vector<8xf32>
    %17 = vector.multi_reduction <add>, %16, %cst_12 [1] : vector<8x8xf32> to vector<8xf32>
    %18 = vector.shape_cast %17 : vector<8xf32> to vector<8x1xf32>
    %19 = tpu.reciprocal %18 {approx = true} : vector<8x1xf32> -> vector<8x1xf32>
    %20 = vector.broadcast %19 : vector<8x1xf32> to vector<8x8xf32>
    %21 = arith.mulf %16, %20 : vector<8x8xf32>
    %cst_13 = arith.constant dense<0.000000e+00> : vector<8x8xf32>
    %22 = tpu.matmul %21, %10, %cst_13 {dimension_numbers = #tpu.dot_dimension_numbers<[1], [0], [0], [1], [0, 0, 1, 1], [], []>} : vector<8x8xf32>, vector<8x8xf32>, vector<8x8xf32> -> vector<8x8xf32>
    %23 = vector.extract_strided_slice %5 {offsets = [0, 8], sizes = [8, 8], strides = [1, 1]} : vector<8x32xf32> to vector<8x8xf32>
    %24 = vector.extract_strided_slice %7 {offsets = [0, 8], sizes = [8, 8], strides = [1, 1]} : vector<8x64xf32> to vector<8x8xf32>
    %25 = vector.extract_strided_slice %7 {offsets = [0, 40], sizes = [8, 8], strides = [1, 1]} : vector<8x64xf32> to vector<8x8xf32>
    %cst_14 = arith.constant dense<0.000000e+00> : vector<8x8xf32>
    %26 = tpu.matmul %23, %24, %cst_14 {dimension_numbers = #tpu.dot_dimension_numbers<[1], [1], [0], [0], [0, 0, 1, 0], [], []>} : vector<8x8xf32>, vector<8x8xf32>, vector<8x8xf32> -> vector<8x8xf32>
    %cst_15 = arith.constant dense<0xFF800000> : vector<8xf32>
    %27 = vector.multi_reduction <maximumf>, %26, %cst_15 [1] : vector<8x8xf32> to vector<8xf32>
    %28 = vector.shape_cast %27 : vector<8xf32> to vector<8x1xf32>
    %29 = vector.broadcast %28 : vector<8x1xf32> to vector<8x8xf32>
    %30 = arith.subf %26, %29 : vector<8x8xf32>
    %31 = math.exp %30 : vector<8x8xf32>
    %cst_16 = arith.constant dense<0.000000e+00> : vector<8xf32>
    %32 = vector.multi_reduction <add>, %31, %cst_16 [1] : vector<8x8xf32> to vector<8xf32>
    %33 = vector.shape_cast %32 : vector<8xf32> to vector<8x1xf32>
    %34 = tpu.reciprocal %33 {approx = true} : vector<8x1xf32> -> vector<8x1xf32>
    %35 = vector.broadcast %34 : vector<8x1xf32> to vector<8x8xf32>
    %36 = arith.mulf %31, %35 : vector<8x8xf32>
    %cst_17 = arith.constant dense<0.000000e+00> : vector<8x8xf32>
    %37 = tpu.matmul %36, %25, %cst_17 {dimension_numbers = #tpu.dot_dimension_numbers<[1], [0], [0], [1], [0, 0, 1, 1], [], []>} : vector<8x8xf32>, vector<8x8xf32>, vector<8x8xf32> -> vector<8x8xf32>
    %38 = vector.extract_strided_slice %5 {offsets = [0, 16], sizes = [8, 8], strides = [1, 1]} : vector<8x32xf32> to vector<8x8xf32>
    %39 = vector.extract_strided_slice %7 {offsets = [0, 16], sizes = [8, 8], strides = [1, 1]} : vector<8x64xf32> to vector<8x8xf32>
    %40 = vector.extract_strided_slice %7 {offsets = [0, 48], sizes = [8, 8], strides = [1, 1]} : vector<8x64xf32> to vector<8x8xf32>
    %cst_18 = arith.constant dense<0.000000e+00> : vector<8x8xf32>
    %41 = tpu.matmul %38, %39, %cst_18 {dimension_numbers = #tpu.dot_dimension_numbers<[1], [1], [0], [0], [0, 0, 1, 0], [], []>} : vector<8x8xf32>, vector<8x8xf32>, vector<8x8xf32> -> vector<8x8xf32>
    %cst_19 = arith.constant dense<0xFF800000> : vector<8xf32>
    %42 = vector.multi_reduction <maximumf>, %41, %cst_19 [1] : vector<8x8xf32> to vector<8xf32>
    %43 = vector.shape_cast %42 : vector<8xf32> to vector<8x1xf32>
    %44 = vector.broadcast %43 : vector<8x1xf32> to vector<8x8xf32>
    %45 = arith.subf %41, %44 : vector<8x8xf32>
    %46 = math.exp %45 : vector<8x8xf32>
    %cst_20 = arith.constant dense<0.000000e+00> : vector<8xf32>
    %47 = vector.multi_reduction <add>, %46, %cst_20 [1] : vector<8x8xf32> to vector<8xf32>
    %48 = vector.shape_cast %47 : vector<8xf32> to vector<8x1xf32>
    %49 = tpu.reciprocal %48 {approx = true} : vector<8x1xf32> -> vector<8x1xf32>
    %50 = vector.broadcast %49 : vector<8x1xf32> to vector<8x8xf32>
    %51 = arith.mulf %46, %50 : vector<8x8xf32>
    %cst_21 = arith.constant dense<0.000000e+00> : vector<8x8xf32>
    %52 = tpu.matmul %51, %40, %cst_21 {dimension_numbers = #tpu.dot_dimension_numbers<[1], [0], [0], [1], [0, 0, 1, 1], [], []>} : vector<8x8xf32>, vector<8x8xf32>, vector<8x8xf32> -> vector<8x8xf32>
    %53 = vector.extract_strided_slice %5 {offsets = [0, 24], sizes = [8, 8], strides = [1, 1]} : vector<8x32xf32> to vector<8x8xf32>
    %54 = vector.extract_strided_slice %7 {offsets = [0, 24], sizes = [8, 8], strides = [1, 1]} : vector<8x64xf32> to vector<8x8xf32>
    %55 = vector.extract_strided_slice %7 {offsets = [0, 56], sizes = [8, 8], strides = [1, 1]} : vector<8x64xf32> to vector<8x8xf32>
    %cst_22 = arith.constant dense<0.000000e+00> : vector<8x8xf32>
    %56 = tpu.matmul %53, %54, %cst_22 {dimension_numbers = #tpu.dot_dimension_numbers<[1], [1], [0], [0], [0, 0, 1, 0], [], []>} : vector<8x8xf32>, vector<8x8xf32>, vector<8x8xf32> -> vector<8x8xf32>
    %cst_23 = arith.constant dense<0xFF800000> : vector<8xf32>
    %57 = vector.multi_reduction <maximumf>, %56, %cst_23 [1] : vector<8x8xf32> to vector<8xf32>
    %58 = vector.shape_cast %57 : vector<8xf32> to vector<8x1xf32>
    %59 = vector.broadcast %58 : vector<8x1xf32> to vector<8x8xf32>
    %60 = arith.subf %56, %59 : vector<8x8xf32>
    %61 = math.exp %60 : vector<8x8xf32>
    %cst_24 = arith.constant dense<0.000000e+00> : vector<8xf32>
    %62 = vector.multi_reduction <add>, %61, %cst_24 [1] : vector<8x8xf32> to vector<8xf32>
    %63 = vector.shape_cast %62 : vector<8xf32> to vector<8x1xf32>
    %64 = tpu.reciprocal %63 {approx = true} : vector<8x1xf32> -> vector<8x1xf32>
    %65 = vector.broadcast %64 : vector<8x1xf32> to vector<8x8xf32>
    %66 = arith.mulf %61, %65 : vector<8x8xf32>
    %cst_25 = arith.constant dense<0.000000e+00> : vector<8x8xf32>
    %67 = tpu.matmul %66, %55, %cst_25 {dimension_numbers = #tpu.dot_dimension_numbers<[1], [0], [0], [1], [0, 0, 1, 1], [], []>} : vector<8x8xf32>, vector<8x8xf32>, vector<8x8xf32> -> vector<8x8xf32>
    %68 = tpu.concatenate %22, %37, %52, %67 in 1 : vector<8x8xf32>, vector<8x8xf32>, vector<8x8xf32>, vector<8x8xf32> -> vector<8x32xf32>
    %c0_26 = arith.constant 0 : index
    %c0_27 = arith.constant 0 : index
    %69 = vector.load %arg5[%c0_26, %c0_27] : memref<32x32xf32, #tpu.memory_space<vmem>>, vector<32x32xf32>
    %cst_28 = arith.constant dense<0.000000e+00> : vector<8x32xf32>
    %70 = tpu.matmul %68, %69, %cst_28 {dimension_numbers = #tpu.dot_dimension_numbers<[1], [0], [0], [1], [0, 0, 1, 1], [], []>} : vector<8x32xf32>, vector<32x32xf32>, vector<8x32xf32> -> vector<8x32xf32>
    %c0_29 = arith.constant 0 : index
    %c0_30 = arith.constant 0 : index
    %71 = vector.load %arg6[%c0_29, %c0_30] : memref<1x32xf32, #tpu.memory_space<vmem>>, vector<1x32xf32>
    %72 = vector.broadcast %71 : vector<1x32xf32> to vector<8x32xf32>
    %73 = arith.addf %70, %72 : vector<8x32xf32>
    %c0_31 = arith.constant 0 : index
    %c0_32 = arith.constant 0 : index
    %c0_33 = arith.constant 0 : index
    %74 = vector.load %arg7[%c0_31, %c0_32, %c0_33] : memref<1x8x32xf32, #tpu.memory_space<vmem>>, vector<1x8x32xf32>
    %75 = vector.shape_cast %74 : vector<1x8x32xf32> to vector<8x32xf32>
    %76 = vector.shape_cast %73 : vector<8x32xf32> to vector<1x8x32xf32>
    tpu.vector_store %arg7[%c0_31, %c0_32, %c0_33], %76 {strides = array<i32>} : memref<1x8x32xf32, #tpu.memory_space<vmem>>, vector<1x8x32xf32>,
    return
  }
  func.func @transform_0(%arg0: i32) -> (i32, i32, i32) {
    %c0_i32 = arith.constant 0 : i32
    %c0_i32_0 = arith.constant 0 : i32
    %c0_i32_1 = arith.constant 0 : i32
    return %arg0, %c0_i32, %c0_i32_0 : i32, i32, i32
  }
  func.func @transform_1(%arg0: i32) -> (i32, i32, i32) {
    %c0_i32 = arith.constant 0 : i32
    %c0_i32_0 = arith.constant 0 : i32
    %c0_i32_1 = arith.constant 0 : i32
    return %arg0, %c0_i32, %c0_i32_0 : i32, i32, i32
  }
  func.func @transform_2(%arg0: i32) -> (i32, i32) {
    %c0_i32 = arith.constant 0 : i32
    %c0_i32_0 = arith.constant 0 : i32
    %c0_i32_1 = arith.constant 0 : i32
    return %c0_i32, %c0_i32_0 : i32, i32
  }
  func.func @transform_3(%arg0: i32) -> (i32, i32) {
    %c0_i32 = arith.constant 0 : i32
    %c0_i32_0 = arith.constant 0 : i32
    %c0_i32_1 = arith.constant 0 : i32
    return %c0_i32, %c0_i32_0 : i32, i32
  }
  func.func @transform_4(%arg0: i32) -> (i32, i32) {
    %c0_i32 = arith.constant 0 : i32
    %c0_i32_0 = arith.constant 0 : i32
    %c0_i32_1 = arith.constant 0 : i32
    return %c0_i32, %c0_i32_0 : i32, i32
  }
  func.func @transform_5(%arg0: i32) -> (i32, i32) {
    %c0_i32 = arith.constant 0 : i32
    %c0_i32_0 = arith.constant 0 : i32
    %c0_i32_1 = arith.constant 0 : i32
    return %c0_i32, %c0_i32_0 : i32, i32
  }
  func.func @transform_6(%arg0: i32) -> (i32, i32, i32) {
    %c0_i32 = arith.constant 0 : i32
    %c0_i32_0 = arith.constant 0 : i32
    %c0_i32_1 = arith.constant 0 : i32
    return %arg0, %c0_i32, %c0_i32_0 : i32, i32, i32
  }
}

</mosaic_0001>

<llo_original>
// kernel: tpu_custom_call.1
$region0: #{tpu_custom_call.1}
  #allocation0 [shape = 'u32[]', space=smem, size = 0x4, offset = 0x4, fixed_abs, tag = 'smem constant byte address 0x4 - core index']
  #allocation1 [shape = 'u32[144,128]{1,0:T(1,128)}', space=vmem, size = 0x12000, scoped, tag = 'internal scratch']
  %s0 = inlined_call_operand.hbm [shape: f32[2,8,32], index: 0, kind: input, shape index: {}]
  %s1 = inlined_call_operand.hbm [shape: f32[2,8,32], index: 1, kind: input, shape index: {}]
  %s2 = inlined_call_operand.hbm [shape: f32[32,32], index: 2, kind: input, shape index: {}]
  %s3 = inlined_call_operand.hbm [shape: f32[32,64], index: 3, kind: input, shape index: {}]
  %s4 = inlined_call_operand.hbm [shape: f32[32,32], index: 4, kind: input, shape index: {}]
  %s5 = inlined_call_operand.vmem [shape: f32[1,32], index: 5, kind: input, shape index: {}]
  %s6 = inlined_call_operand.hbm [shape: f32[2,8,32], index: 6, kind: output, shape index: {}]
  %s7 = sld [smem:[#allocation0]]
  $region77: #{tpu_custom_call.1} parent=0
    _
  %s9 = ssub.s32 1, %s7
  %s10 = scalar_select 0, %s9, %s7
  $region1: #{tpu_custom_call.1} parent=0
    #allocation2 [shape = 'u8[8192]{0}', space=vmem, size = 0x2000, scoped, tag = 'input window, operand 0']
    #allocation3 [shape = 's32[2]{0}', space=sflag, size = 0x8, scoped, tag = 'scoped memory for tpu_custom_call.1']
    #allocation4 [shape = 's32[2]{0}', space=sflag, size = 0x8, scoped, tag = 'scoped memory for tpu_custom_call.1']
    #allocation5 [shape = 'u8[8192]{0}', space=vmem, size = 0x2000, scoped, tag = 'input window, operand 1']
    #allocation6 [shape = 's32[2]{0}', space=sflag, size = 0x8, scoped, tag = 'scoped memory for tpu_custom_call.1']
    #allocation7 [shape = 'u8[16384]{0}', space=vmem, size = 0x4000, scoped, tag = 'input window, operand 2, single buffered']
    #allocation8 [shape = 'u8[16384]{0}', space=vmem, size = 0x4000, scoped, tag = 'input window, operand 3, single buffered']
    #allocation9 [shape = 's32[1]{0}', space=sflag, size = 0x4, scoped, tag = 'scoped memory for tpu_custom_call.1']
    #allocation10 [shape = 'u8[16384]{0}', space=vmem, size = 0x4000, scoped, tag = 'input window, operand 4, single buffered']
    #allocation11 [shape = 'u8[8192]{0}', space=vmem, size = 0x2000, scoped, tag = 'output window, operand 0']
    %11 = vsyncpa [#allocation3], 0
    %s12 = scalar_lea.sflag [#allocation3], 1
    %13 = vsyncpa %s12, 0
    %14 = vsyncpa [#allocation6], 0
    %s15 = scalar_lea.sflag [#allocation6], 1
    %16 = vsyncpa %s15, 0
    %17 = vsyncpa [#allocation9], 0
    %18 = vsyncpa [#allocation4], 0
    %s19 = scalar_lea.sflag [#allocation4], 1
    %20 = vsyncpa %s19, 0
    loop: start=0, step=1, limit=4
    $region2: #{tpu_custom_call.1} parent=1 // loop_pre_header
      _
    $region3: #{tpu_custom_call.1} parent=1 // loop_header
      %s22 = sphi 0, %s26
      %p23 = scmp.ge.s32.totalorder %s22, 4
      %s32 = sphi 0, %s34
      %s35 = sphi 0, %s32
      %s36 = sphi 0, %s35
      %s52 = sphi 0, %s36
      %s58 = sphi 0, %s60
      %s61 = sphi 0, %s58
      %s62 = sphi 0, %s61
      %s78 = sphi 0, %s62
      %s82 = sphi 0, %s82
      %s84 = sphi 0, %s82
      %s85 = sphi 0, %s84
      %s99 = sphi 0, %s85
      %s103 = sphi 0, %s103
      %s105 = sphi 0, %s103
      %s106 = sphi 0, %s105
      %s120 = sphi 0, %s106
      %s124 = sphi 0, %s124
      %s126 = sphi 0, %s124
      %s127 = sphi 0, %s126
      %s141 = sphi 0, %s127
      %s145 = sphi 0, %s145
      %s147 = sphi 0, %s145
      %s148 = sphi 0, %s147
      %s162 = sphi 0, %s148
      %s168 = sphi 0, %s170
      %s171 = sphi 0, %s168
      %s172 = sphi 0, %s171
      %s188 = sphi 0, %s172
    $region4: #{tpu_custom_call.1} parent=1 // loop_header_branch
      %25 = sbr.rel (%p23) target = $region8
    $region5: #{tpu_custom_call.1} parent=1 // loop_body
      %s27 = ssub.s32 %s22, 1
      %s28 = ssub.s32 %s22, 2
      %s29 = sadd.s32 %s22, 1
      %s30 = ssub.s32 %s22, %s29
      %p31 = scmp.eq.s32.totalorder %s30, 0
      %s33 = sadd.s32 %s32, 1
      %s34 = scalar_select %p31, %s32, %s33
      %p37 = pneg %p31
      %p38 = scmp.eq.s32.totalorder %s22, 1
      %p39 = por %p37, %p38
      %p40 = scmp.ne.s32.totalorder %s32, %s35
      %p41 = scmp.eq.s32.totalorder %s22, 0
      %p42 = por %p40, %p41
      %p43 = scmp.ne.s32.totalorder %s32, %s35
      %p44 = scmp.eq.s32.totalorder %s27, 1
      %p45 = por %p43, %p44
      %p46 = scmp.ne.s32.totalorder %s35, %s36
      %p47 = scmp.eq.s32.totalorder %s27, 0
      %p48 = por %p46, %p47
      %p49 = scmp.ne.s32.totalorder %s35, %s36
      %p50 = scmp.eq.s32.totalorder %s28, 1
      %p51 = por %p49, %p50
      %p53 = scmp.ne.s32.totalorder %s36, %s52
      %p54 = scmp.eq.s32.totalorder %s28, 0
      %p55 = por %p53, %p54
      %s56 = ssub.s32 %s22, %s29
      %p57 = scmp.eq.s32.totalorder %s56, 0
      %s59 = sadd.s32 %s58, 1
      %s60 = scalar_select %p57, %s58, %s59
      %p63 = pneg %p57
      %p64 = scmp.eq.s32.totalorder %s22, 1
      %p65 = por %p63, %p64
      %p66 = scmp.ne.s32.totalorder %s58, %s61
      %p67 = scmp.eq.s32.totalorder %s22, 0
      %p68 = por %p66, %p67
      %p69 = scmp.ne.s32.totalorder %s58, %s61
      %p70 = scmp.eq.s32.totalorder %s27, 1
      %p71 = por %p69, %p70
      %p72 = scmp.ne.s32.totalorder %s61, %s62
      %p73 = scmp.eq.s32.totalorder %s27, 0
      %p74 = por %p72, %p73
      %p75 = scmp.ne.s32.totalorder %s61, %s62
      %p76 = scmp.eq.s32.totalorder %s28, 1
      %p77 = por %p75, %p76
      %p79 = scmp.ne.s32.totalorder %s62, %s78
      %p80 = scmp.eq.s32.totalorder %s28, 0
      %p81 = por %p79, %p80
      %s83 = sadd.s32 %s82, 1
      %p86 = scmp.eq.s32.totalorder %s22, 1
      %p87 = scmp.ne.s32.totalorder %s82, %s84
      %p88 = scmp.eq.s32.totalorder %s22, 0
      %p89 = por %p87, %p88
      %p90 = scmp.ne.s32.totalorder %s82, %s84
      %p91 = scmp.eq.s32.totalorder %s27, 1
      %p92 = por %p90, %p91
      %p93 = scmp.ne.s32.totalorder %s84, %s85
      %p94 = scmp.eq.s32.totalorder %s27, 0
      %p95 = por %p93, %p94
      %p96 = scmp.ne.s32.totalorder %s84, %s85
      %p97 = scmp.eq.s32.totalorder %s28, 1
      %p98 = por %p96, %p97
      %p100 = scmp.ne.s32.totalorder %s85, %s99
      %p101 = scmp.eq.s32.totalorder %s28, 0
      %p102 = por %p100, %p101
      %s104 = sadd.s32 %s103, 1
      %p107 = scmp.eq.s32.totalorder %s22, 1
      %p108 = scmp.ne.s32.totalorder %s103, %s105
      %p109 = scmp.eq.s32.totalorder %s22, 0
      %p110 = por %p108, %p109
      %p111 = scmp.ne.s32.totalorder %s103, %s105
      %p112 = scmp.eq.s32.totalorder %s27, 1
      %p113 = por %p111, %p112
      %p114 = scmp.ne.s32.totalorder %s105, %s106
      %p115 = scmp.eq.s32.totalorder %s27, 0
      %p116 = por %p114, %p115
      %p117 = scmp.ne.s32.totalorder %s105, %s106
      %p118 = scmp.eq.s32.totalorder %s28, 1
      %p119 = por %p117, %p118
      %p121 = scmp.ne.s32.totalorder %s106, %s120
      %p122 = scmp.eq.s32.totalorder %s28, 0
      %p123 = por %p121, %p122
      %s125 = sadd.s32 %s124, 1
      %p128 = scmp.eq.s32.totalorder %s22, 1
      %p129 = scmp.ne.s32.totalorder %s124, %s126
      %p130 = scmp.eq.s32.totalorder %s22, 0
      %p131 = por %p129, %p130
      %p132 = scmp.ne.s32.totalorder %s124, %s126
      %p133 = scmp.eq.s32.totalorder %s27, 1
      %p134 = por %p132, %p133
      %p135 = scmp.ne.s32.totalorder %s126, %s127
      %p136 = scmp.eq.s32.totalorder %s27, 0
      %p137 = por %p135, %p136
      %p138 = scmp.ne.s32.totalorder %s126, %s127
      %p139 = scmp.eq.s32.totalorder %s28, 1
      %p140 = por %p138, %p139
      %p142 = scmp.ne.s32.totalorder %s127, %s141
      %p143 = scmp.eq.s32.totalorder %s28, 0
      %p144 = por %p142, %p143
      %s146 = sadd.s32 %s145, 1
      %p149 = scmp.eq.s32.totalorder %s22, 1
      %p150 = scmp.ne.s32.totalorder %s145, %s147
      %p151 = scmp.eq.s32.totalorder %s22, 0
      %p152 = por %p150, %p151
      %p153 = scmp.ne.s32.totalorder %s145, %s147
      %p154 = scmp.eq.s32.totalorder %s27, 1
      %p155 = por %p153, %p154
      %p156 = scmp.ne.s32.totalorder %s147, %s148
      %p157 = scmp.eq.s32.totalorder %s27, 0
      %p158 = por %p156, %p157
      %p159 = scmp.ne.s32.totalorder %s147, %s148
      %p160 = scmp.eq.s32.totalorder %s28, 1
      %p161 = por %p159, %p160
      %p163 = scmp.ne.s32.totalorder %s148, %s162
      %p164 = scmp.eq.s32.totalorder %s28, 0
      %p165 = por %p163, %p164
      %s166 = ssub.s32 %s22, %s29
      %p167 = scmp.eq.s32.totalorder %s166, 0
      %s169 = sadd.s32 %s168, 1
      %s170 = scalar_select %p167, %s168, %s169
      %p173 = pneg %p167
      %p174 = scmp.eq.s32.totalorder %s22, 1
      %p175 = por %p173, %p174
      %p176 = scmp.ne.s32.totalorder %s168, %s171
      %p177 = scmp.eq.s32.totalorder %s22, 0
      %p178 = por %p176, %p177
      %p179 = scmp.ne.s32.totalorder %s168, %s171
      %p180 = scmp.eq.s32.totalorder %s27, 1
      %p181 = por %p179, %p180
      %p182 = scmp.ne.s32.totalorder %s171, %s172
      %p183 = scmp.eq.s32.totalorder %s27, 0
      %p184 = por %p182, %p183
      %p185 = scmp.ne.s32.totalorder %s171, %s172
      %p186 = scmp.eq.s32.totalorder %s28, 1
      %p187 = por %p185, %p186
      %p189 = scmp.ne.s32.totalorder %s172, %s188
      %p190 = scmp.eq.s32.totalorder %s28, 0
      %p191 = por %p189, %p190
      %p192 = scmp.le.s32.totalorder 1, %s22
      %p193 = scmp.lt.s32.totalorder %s22, 3
      %p194 = pnand %p192, %p193
      %p195 = pneg %p194
      // Predicated region
      $region9: #{tpu_custom_call.1} parent=5 // pred_check
        _
      $region10: #{tpu_custom_call.1} parent=5 // pred_check_branch
        %197 = sbr.rel (%p194) target = $region12
      $region11: #{tpu_custom_call.1} parent=5 // pred_region
        %s198 = ssub.s32 %s22, 1
        // Predicated region
        $region13: #{tpu_custom_call.1} parent=11 // pred_check
          %p199 = pneg %p95
        $region14: #{tpu_custom_call.1} parent=11 // pred_check_branch
          %201 = sbr.rel (%p199) target = $region16
        $region15: #{tpu_custom_call.1} parent=11 // pred_region
          %s203 = ssub.s32 512, 512
          %204 = vsyncadd [#allocation6], %s203
          %s205 = sshll.u32 [#allocation7], 4
          %s206 = int_to_ptr.vmem [resolvable:$true] %s205
          %211 = dma.hbm_to_vmem [thread:$0]  %s2, 512, %s206, [#allocation6], 128, 128, 8
        $region16: #{tpu_custom_call.1} parent=11 // pred_fallthru
          _
        // Predicated region
        $region17: #{tpu_custom_call.1} parent=11 // pred_check
          %p212 = pneg %p116
        $region18: #{tpu_custom_call.1} parent=11 // pred_check_branch
          %214 = sbr.rel (%p212) target = $region20
        $region19: #{tpu_custom_call.1} parent=11 // pred_region
          %s216 = ssub.s32 512, 512
          %217 = vsyncadd [#allocation9], %s216
          %s218 = sshll.u32 [#allocation8], 4
          %s219 = int_to_ptr.vmem [resolvable:$true] %s218
          %224 = dma.hbm_to_vmem [thread:$0]  %s3, 512, %s219, [#allocation9], 128, 128, 8
        $region20: #{tpu_custom_call.1} parent=11 // pred_fallthru
          _
        // Predicated region
        $region21: #{tpu_custom_call.1} parent=11 // pred_check
          %p225 = pneg %p137
        $region22: #{tpu_custom_call.1} parent=11 // pred_check_branch
          %227 = sbr.rel (%p225) target = $region24
        $region23: #{tpu_custom_call.1} parent=11 // pred_region
          %s229 = ssub.s32 512, 512
          %230 = vsyncadd [#allocation9], %s229
          %s231 = sshll.u32 [#allocation10], 4
          %s232 = int_to_ptr.vmem [resolvable:$true] %s231
          %237 = dma.hbm_to_vmem [thread:$0]  %s4, 512, %s232, [#allocation9], 128, 128, 8
        $region24: #{tpu_custom_call.1} parent=11 // pred_fallthru
          _
        // Predicated region
        $region25: #{tpu_custom_call.1} parent=11 // pred_check
          %p238 = pneg %p158
        $region26: #{tpu_custom_call.1} parent=11 // pred_check_branch
          %240 = sbr.rel (%p238) target = $region28
        $region27: #{tpu_custom_call.1} parent=11 // pred_region
          _
        $region28: #{tpu_custom_call.1} parent=11 // pred_fallthru
          _
      $region12: #{tpu_custom_call.1} parent=5 // pred_fallthru
        _
      %p241 = scmp.lt.s32.totalorder %s22, 2
      // Predicated region
      $region29: #{tpu_custom_call.1} parent=5 // pred_check
        %p242 = pneg %p241
      $region30: #{tpu_custom_call.1} parent=5 // pred_check_branch
        %244 = sbr.rel (%p242) target = $region32
      $region31: #{tpu_custom_call.1} parent=5 // pred_region
        // Predicated region
        $region33: #{tpu_custom_call.1} parent=31 // pred_check
          %p245 = pneg %p42
        $region34: #{tpu_custom_call.1} parent=31 // pred_check_branch
          %247 = sbr.rel (%p245) target = $region36
        $region35: #{tpu_custom_call.1} parent=31 // pred_region
          %s248 = sand.u32 %s32, 1
          %s249 = scalar_lea.sflag [#allocation3], %s248
          %s250 = sand.u32 %s32, 1
          %s251 = smul.addr %s250, 8
          %s252 = scalar_lea.vmem [#allocation2], %s251
          %s254 = ssub.s32 128, 128
          %255 = vsyncadd %s249, %s254
          %s256 = smul.addr %s22, 128
          %s257 = scalar_lea.hbm %s0, %s256
          %s259 = sshll.u32 %s252, 4
          %s260 = int_to_ptr.vmem [resolvable:$true] %s259
          %262 = dma.hbm_to_vmem [thread:$0]  %s257, 128, %s260, %s249
        $region36: #{tpu_custom_call.1} parent=31 // pred_fallthru
          _
        // Predicated region
        $region37: #{tpu_custom_call.1} parent=31 // pred_check
          %p263 = pneg %p68
        $region38: #{tpu_custom_call.1} parent=31 // pred_check_branch
          %265 = sbr.rel (%p263) target = $region40
        $region39: #{tpu_custom_call.1} parent=31 // pred_region
          %s266 = sand.u32 %s22, 1
          %s267 = scalar_lea.sflag [#allocation6], %s266
          %s268 = sand.u32 %s58, 1
          %s269 = smul.addr %s268, 8
          %s270 = scalar_lea.vmem [#allocation5], %s269
          %s272 = ssub.s32 128, 128
          %273 = vsyncadd %s267, %s272
          %s274 = smul.addr %s22, 128
          %s275 = scalar_lea.hbm %s1, %s274
          %s277 = sshll.u32 %s270, 4
          %s278 = int_to_ptr.vmem [resolvable:$true] %s277
          %280 = dma.hbm_to_vmem [thread:$0]  %s275, 128, %s278, %s267
        $region40: #{tpu_custom_call.1} parent=31 // pred_fallthru
          _
      $region32: #{tpu_custom_call.1} parent=5 // pred_fallthru
        _
      %p281 = scmp.le.s32.totalorder 1, %s22
      %p282 = scmp.lt.s32.totalorder %s22, 3
      %p283 = pnand %p281, %p282
      %p284 = pneg %p283
      // Predicated region
      $region41: #{tpu_custom_call.1} parent=5 // pred_check
        _
      $region42: #{tpu_custom_call.1} parent=5 // pred_check_branch
        %286 = sbr.rel (%p283) target = $region44
      $region43: #{tpu_custom_call.1} parent=5 // pred_region
        %s287 = ssub.s32 %s22, 1
        %s288 = sand.u32 %s35, 1
        %s289 = scalar_lea.sflag [#allocation3], %s288
        %s290 = sand.u32 %s35, 1
        %s291 = smul.addr %s290, 8
        %s292 = scalar_lea.vmem [#allocation2], %s291
        // Predicated region
        $region45: #{tpu_custom_call.1} parent=43 // pred_check
          %p293 = pneg %p48
        $region46: #{tpu_custom_call.1} parent=43 // pred_check_branch
          %295 = sbr.rel (%p293) target = $region48
        $region47: #{tpu_custom_call.1} parent=43 // pred_region
          %296 = dma.done %s289, 128
        $region48: #{tpu_custom_call.1} parent=43 // pred_fallthru
          _
        %s297 = sand.u32 %s27, 1
        %s298 = scalar_lea.sflag [#allocation6], %s297
        %s299 = sand.u32 %s61, 1
        %s300 = smul.addr %s299, 8
        %s301 = scalar_lea.vmem [#allocation5], %s300
        // Predicated region
        $region49: #{tpu_custom_call.1} parent=43 // pred_check
          %p302 = pneg %p74
        $region50: #{tpu_custom_call.1} parent=43 // pred_check_branch
          %304 = sbr.rel (%p302) target = $region52
        $region51: #{tpu_custom_call.1} parent=43 // pred_region
          %305 = dma.done %s298, 128
        $region52: #{tpu_custom_call.1} parent=43 // pred_fallthru
          _
        // Predicated region
        $region53: #{tpu_custom_call.1} parent=43 // pred_check
          %p306 = pneg %p95
        $region54: #{tpu_custom_call.1} parent=43 // pred_check_branch
          %308 = sbr.rel (%p306) target = $region56
        $region55: #{tpu_custom_call.1} parent=43 // pred_region
          %309 = dma.done [#allocation6], 512
        $region56: #{tpu_custom_call.1} parent=43 // pred_fallthru
          _
        // Predicated region
        $region57: #{tpu_custom_call.1} parent=43 // pred_check
          %p310 = pneg %p116
        $region58: #{tpu_custom_call.1} parent=43 // pred_check_branch
          %312 = sbr.rel (%p310) target = $region60
        $region59: #{tpu_custom_call.1} parent=43 // pred_region
          %313 = dma.done [#allocation9], 512
        $region60: #{tpu_custom_call.1} parent=43 // pred_fallthru
          _
        // Predicated region
        $region61: #{tpu_custom_call.1} parent=43 // pred_check
          %p314 = pneg %p137
        $region62: #{tpu_custom_call.1} parent=43 // pred_check_branch
          %316 = sbr.rel (%p314) target = $region64
        $region63: #{tpu_custom_call.1} parent=43 // pred_region
          %317 = dma.done [#allocation9], 512
        $region64: #{tpu_custom_call.1} parent=43 // pred_fallthru
          _
        %s318 = sand.u32 %s35, 1
        %s319 = scalar_lea.sflag [#allocation3], %s318
        %s320 = sand.u32 %s35, 1
        %s321 = smul.addr %s320, 8
        %s322 = scalar_lea.vmem [#allocation2], %s321
        %p323 = pneg %p48
        %p324 = pneg %p45
        %s325 = sand.u32 %s27, 1
        %s326 = scalar_lea.sflag [#allocation6], %s325
        %s327 = sand.u32 %s61, 1
        %s328 = smul.addr %s327, 8
        %s329 = scalar_lea.vmem [#allocation5], %s328
        %p330 = pneg %p74
        %p331 = pneg %p71
        %p332 = pneg %p95
        %p333 = pneg %p92
        %p334 = pneg %p116
        %p335 = pneg %p113
        %p336 = pneg %p137
        %p337 = pneg %p134
        %p338 = pneg %p158
        %p339 = pneg %p155
        %p340 = pneg %p184
        %p341 = pneg %p181
        %s342 = sand.u32 %s171, 1
        %s343 = scalar_lea.sflag [#allocation4], %s342
        %s344 = sand.u32 %s171, 1
        %s345 = smul.addr %s344, 8
        %s346 = scalar_lea.vmem [#allocation11], %s345
        %v347 = vld [vmem:[%s292] sm:$0xff]
        %v348 = vld [vmem:[%s301] sm:$0xff]
        %v349 = vld [vmem:[#allocation7] sm:$0xff]
        %v350 = vld [vmem:[#allocation7 + $0x8] sm:$0xff]
        %v351 = vld [vmem:[#allocation7 + $0x10] sm:$0xff]
        %v352 = vld [vmem:[#allocation7 + $0x18] sm:$0xff]
        %vm353 = vcmask 261120
        %v355 = vsel %vm353, %v347, 0
        %357 = vmatprep.subr.mxu0 0.0
        %358 = vmatpush1.msra.mxu0 %v349
        %359 = vmatprep.subr.mxu0 0.0
        %360 = vmatpush1.msra.mxu0 %v350
        %361 = vmatprep.subr.mxu0 0.0
        %362 = vmatpush1.msra.mxu0 %v351
        %363 = vmatprep.subr.mxu0 0.0
        %364 = vmatpush1.msra.mxu0 %v352
        %365 = vmatprep.subr.mxu0 0.0
        %366 = vmatpush1.msra.mxu0 0.0
        %367 = vmatprep.subr.mxu0 0.0
        %368 = vmatpush1.msra.mxu0 0.0
        %369 = vmatprep.subr.mxu0 0.0
        %370 = vmatpush1.msra.mxu0 0.0
        %371 = vmatprep.subr.mxu0 0.0
        %372 = vmatpush1.msra.mxu0 0.0
        %373 = vmatprep.subr.mxu0 0.0
        %374 = vmatpush1.msra.mxu0 0.0
        %375 = vmatprep.subr.mxu0 0.0
        %376 = vmatpush1.msra.mxu0 0.0
        %377 = vmatprep.subr.mxu0 0.0
        %378 = vmatpush1.msra.mxu0 0.0
        %379 = vmatprep.subr.mxu0 0.0
        %380 = vmatpush1.msra.mxu0 0.0
        %381 = vmatprep.subr.mxu0 0.0
        %382 = vmatpush1.msra.mxu0 0.0
        %383 = vmatprep.subr.mxu0 0.0
        %384 = vmatpush1.msra.mxu0 0.0
        %385 = vmatprep.subr.mxu0 0.0
        %386 = vmatpush1.msra.mxu0 0.0
        %387 = vmatprep.subr.mxu0 0.0
        %388 = vmatpush1.msra.mxu0 0.0
        %389 = vmatprep.subr.mxu0 0.0
        %390 = vmatpush1.msra.mxu0 0.0
        %391 = vmatprep.subr.mxu0 0.0
        %392 = vmatpush1.msra.mxu0 0.0
        %393 = vmatprep.subr.mxu0 0.0
        %394 = vmatpush1.msra.mxu0 0.0
        %395 = vmatprep.subr.mxu0 0.0
        %396 = vmatpush1.msra.mxu0 0.0
        %397 = vmatprep.subr.mxu0 0.0
        %398 = vmatpush1.msra.mxu0 0.0
        %399 = vmatprep.subr.mxu0 0.0
        %400 = vmatpush1.msra.mxu0 0.0
        %401 = vmatprep.subr.mxu0 0.0
        %402 = vmatpush1.msra.mxu0 0.0
        %403 = vmatprep.subr.mxu0 0.0
        %404 = vmatpush1.msra.mxu0 0.0
        %405 = vmatprep.subr.mxu0 0.0
        %406 = vmatpush1.msra.mxu0 0.0
        %407 = vmatprep.subr.mxu0 0.0
        %408 = vmatpush1.msra.mxu0 0.0
        %409 = vmatprep.subr.mxu0 0.0
        %410 = vmatpush1.msra.mxu0 0.0
        %411 = vmatprep.subr.mxu0 0.0
        %412 = vmatpush1.msra.mxu0 0.0
        %413 = vmatprep.subr.mxu0 0.0
        %414 = vmatpush1.msra.mxu0 0.0
        %415 = vmatprep.subr.mxu0 0.0
        %416 = vmatpush1.msra.mxu0 0.0
        %417 = vmatprep.subr.mxu0 0.0
        %418 = vmatpush1.msra.mxu0 0.0
        %419 = vmatprep.subr.mxu0 0.0
        %420 = vmatpush1.msra.mxu0 0.0
        %421 = vmatprep.mubr.f32.mxu0 0.0
        %422 = vmatmul.mubr.f32.gmra.mrb[0].mxu0 %v355
        %v423 = vpop.f32.mrb[0].mxu0
        %v424 = vadd.f32 0.0, %v423
        %v425 = vpop.f32.mrb[0].mxu0
        %426 = vdwg.mxu0
        %v427 = vld [vmem:[#allocation8] sm:$0xff]
        %v428 = vld [vmem:[#allocation8 + $0x8] sm:$0xff]
        %v429 = vld [vmem:[#allocation8 + $0x10] sm:$0xff]
        %v430 = vld [vmem:[#allocation8 + $0x18] sm:$0xff]
        %v432 = vsel %vm353, %v348, 0
        %434 = vmatprep.subr.mxu0 0.0
        %435 = vmatpush1.msra.mxu0 %v427
        %436 = vmatprep.subr.mxu0 0.0
        %437 = vmatpush1.msra.mxu0 %v428
        %438 = vmatprep.subr.mxu0 0.0
        %439 = vmatpush1.msra.mxu0 %v429
        %440 = vmatprep.subr.mxu0 0.0
        %441 = vmatpush1.msra.mxu0 %v430
        %442 = vmatprep.subr.mxu0 0.0
        %443 = vmatpush1.msra.mxu0 0.0
        %444 = vmatprep.subr.mxu0 0.0
        %445 = vmatpush1.msra.mxu0 0.0
        %446 = vmatprep.subr.mxu0 0.0
        %447 = vmatpush1.msra.mxu0 0.0
        %448 = vmatprep.subr.mxu0 0.0
        %449 = vmatpush1.msra.mxu0 0.0
        %450 = vmatprep.subr.mxu0 0.0
        %451 = vmatpush1.msra.mxu0 0.0
        %452 = vmatprep.subr.mxu0 0.0
        %453 = vmatpush1.msra.mxu0 0.0
        %454 = vmatprep.subr.mxu0 0.0
        %455 = vmatpush1.msra.mxu0 0.0
        %456 = vmatprep.subr.mxu0 0.0
        %457 = vmatpush1.msra.mxu0 0.0
        %458 = vmatprep.subr.mxu0 0.0
        %459 = vmatpush1.msra.mxu0 0.0
        %460 = vmatprep.subr.mxu0 0.0
        %461 = vmatpush1.msra.mxu0 0.0
        %462 = vmatprep.subr.mxu0 0.0
        %463 = vmatpush1.msra.mxu0 0.0
        %464 = vmatprep.subr.mxu0 0.0
        %465 = vmatpush1.msra.mxu0 0.0
        %466 = vmatprep.subr.mxu0 0.0
        %467 = vmatpush1.msra.mxu0 0.0
        %468 = vmatprep.subr.mxu0 0.0
        %469 = vmatpush1.msra.mxu0 0.0
        %470 = vmatprep.subr.mxu0 0.0
        %471 = vmatpush1.msra.mxu0 0.0
        %472 = vmatprep.subr.mxu0 0.0
        %473 = vmatpush1.msra.mxu0 0.0
        %474 = vmatprep.subr.mxu0 0.0
        %475 = vmatpush1.msra.mxu0 0.0
        %476 = vmatprep.subr.mxu0 0.0
        %477 = vmatpush1.msra.mxu0 0.0
        %478 = vmatprep.subr.mxu0 0.0
        %479 = vmatpush1.msra.mxu0 0.0
        %480 = vmatprep.subr.mxu0 0.0
        %481 = vmatpush1.msra.mxu0 0.0
        %482 = vmatprep.subr.mxu0 0.0
        %483 = vmatpush1.msra.mxu0 0.0
        %484 = vmatprep.subr.mxu0 0.0
        %485 = vmatpush1.msra.mxu0 0.0
        %486 = vmatprep.subr.mxu0 0.0
        %487 = vmatpush1.msra.mxu0 0.0
        %488 = vmatprep.subr.mxu0 0.0
        %489 = vmatpush1.msra.mxu0 0.0
        %490 = vmatprep.subr.mxu0 0.0
        %491 = vmatpush1.msra.mxu0 0.0
        %492 = vmatprep.subr.mxu0 0.0
        %493 = vmatpush1.msra.mxu0 0.0
        %494 = vmatprep.subr.mxu0 0.0
        %495 = vmatpush1.msra.mxu0 0.0
        %496 = vmatprep.subr.mxu0 0.0
        %497 = vmatpush1.msra.mxu0 0.0
        %498 = vmatprep.mubr.f32.mxu0 0.0
        %499 = vmatmul.mubr.f32.gmra.mrb[0].mxu0 %v432
        %v500 = vpop.f32.mrb[0].mxu0
        %v501 = vadd.f32 0.0, %v500
        %v502 = vpop.f32.mrb[0].mxu0
        %503 = vdwg.mxu0
        %vm504 = vcmask 64512
        %v506 = vsel %vm504, %v424, 0
        %v509 = vsel %vm504, %v501, 0
        %511 = vmatprep.subr.mxu0 0.0
        %512 = vmatpush1.xpose.msra.mxu0 %v509
        %513 = vmatprep.subr.mxu0 0.0
        %514 = vmatpush1.xpose.msra.mxu0 0.0
        %515 = vmatprep.subr.mxu0 0.0
        %516 = vmatpush1.xpose.msra.mxu0 0.0
        %517 = vmatprep.subr.mxu0 0.0
        %518 = vmatpush1.xpose.msra.mxu0 0.0
        %519 = vmatprep.subr.mxu0 0.0
        %520 = vmatpush1.xpose.msra.mxu0 0.0
        %521 = vmatprep.subr.mxu0 0.0
        %522 = vmatpush1.xpose.msra.mxu0 0.0
        %523 = vmatprep.subr.mxu0 0.0
        %524 = vmatpush1.xpose.msra.mxu0 0.0
        %525 = vmatprep.subr.mxu0 0.0
        %526 = vmatpush1.xpose.msra.mxu0 0.0
        %527 = vmatprep.subr.mxu0 0.0
        %528 = vmatpush1.xpose.msra.mxu0 0.0
        %529 = vmatprep.subr.mxu0 0.0
        %530 = vmatpush1.xpose.msra.mxu0 0.0
        %531 = vmatprep.subr.mxu0 0.0
        %532 = vmatpush1.xpose.msra.mxu0 0.0
        %533 = vmatprep.subr.mxu0 0.0
        %534 = vmatpush1.xpose.msra.mxu0 0.0
        %535 = vmatprep.subr.mxu0 0.0
        %536 = vmatpush1.xpose.msra.mxu0 0.0
        %537 = vmatprep.subr.mxu0 0.0
        %538 = vmatpush1.xpose.msra.mxu0 0.0
        %539 = vmatprep.subr.mxu0 0.0
        %540 = vmatpush1.xpose.msra.mxu0 0.0
        %541 = vmatprep.subr.mxu0 0.0
        %542 = vmatpush1.xpose.msra.mxu0 0.0
        %543 = vmatprep.subr.mxu0 0.0
        %544 = vmatpush1.xpose.msra.mxu0 0.0
        %545 = vmatprep.subr.mxu0 0.0
        %546 = vmatpush1.xpose.msra.mxu0 0.0
        %547 = vmatprep.subr.mxu0 0.0
        %548 = vmatpush1.xpose.msra.mxu0 0.0
        %549 = vmatprep.subr.mxu0 0.0
        %550 = vmatpush1.xpose.msra.mxu0 0.0
        %551 = vmatprep.subr.mxu0 0.0
        %552 = vmatpush1.xpose.msra.mxu0 0.0
        %553 = vmatprep.subr.mxu0 0.0
        %554 = vmatpush1.xpose.msra.mxu0 0.0
        %555 = vmatprep.subr.mxu0 0.0
        %556 = vmatpush1.xpose.msra.mxu0 0.0
        %557 = vmatprep.subr.mxu0 0.0
        %558 = vmatpush1.xpose.msra.mxu0 0.0
        %559 = vmatprep.subr.mxu0 0.0
        %560 = vmatpush1.xpose.msra.mxu0 0.0
        %561 = vmatprep.subr.mxu0 0.0
        %562 = vmatpush1.xpose.msra.mxu0 0.0
        %563 = vmatprep.subr.mxu0 0.0
        %564 = vmatpush1.xpose.msra.mxu0 0.0
        %565 = vmatprep.subr.mxu0 0.0
        %566 = vmatpush1.xpose.msra.mxu0 0.0
        %567 = vmatprep.subr.mxu0 0.0
        %568 = vmatpush1.xpose.msra.mxu0 0.0
        %569 = vmatprep.subr.mxu0 0.0
        %570 = vmatpush1.xpose.msra.mxu0 0.0
        %571 = vmatprep.subr.mxu0 0.0
        %572 = vmatpush1.xpose.msra.mxu0 0.0
        %573 = vmatprep.subr.mxu0 0.0
        %574 = vmatpush1.xpose.msra.mxu0 0.0
        %575 = vmatprep.mubr.f32.mxu0 0.0
        %576 = vmatmul.mubr.f32.gmra.mrb[0].mxu0 %v506
        %v577 = vpop.f32.mrb[0].mxu0
        %v578 = vadd.f32 0.0, %v577
        %v579 = vpop.f32.mrb[0].mxu0
        %580 = vdwg.mxu0
        %v581 = vsel %vm504, %v578, -inf
        %582 = vmax.xlane.f32.xlu0 %v581
        %v583 = vpop.xlane.xlu0 %582
        %v584 = vsub.f32 %v578, %v583
        %v585 = vmul.f32 %v584, 1.442695
        %v586 = vpow.pop %v585
        %v587 = vsel %vm504, %v586, 0.0
        %588 = vadd.xlane.f32.xlu0 %v587
        %v589 = vpop.xlane.xlu0 %588
        %v590 = vrcp.pop %v589
        %v591 = vmul.f32 %v586, %v590
        %592 = vrot.lane.b32.xlu0 %v501, 96
        %v593 = vpop.permute.xlu0 %592
        %v596 = vsel %vm504, %v591, 0
        %598 = vmatprep.subr.mxu0 0.0
        %599 = vmatpush1.msra.mxu0 %v593
        %600 = vmatprep.subr.mxu0 0.0
        %601 = vmatpush1.msra.mxu0 0.0
        %602 = vmatprep.subr.mxu0 0.0
        %603 = vmatpush1.msra.mxu0 0.0
        %604 = vmatprep.subr.mxu0 0.0
        %605 = vmatpush1.msra.mxu0 0.0
        %606 = vmatprep.subr.mxu0 0.0
        %607 = vmatpush1.msra.mxu0 0.0
        %608 = vmatprep.subr.mxu0 0.0
        %609 = vmatpush1.msra.mxu0 0.0
        %610 = vmatprep.subr.mxu0 0.0
        %611 = vmatpush1.msra.mxu0 0.0
        %612 = vmatprep.subr.mxu0 0.0
        %613 = vmatpush1.msra.mxu0 0.0
        %614 = vmatprep.subr.mxu0 0.0
        %615 = vmatpush1.msra.mxu0 0.0
        %616 = vmatprep.subr.mxu0 0.0
        %617 = vmatpush1.msra.mxu0 0.0
        %618 = vmatprep.subr.mxu0 0.0
        %619 = vmatpush1.msra.mxu0 0.0
        %620 = vmatprep.subr.mxu0 0.0
        %621 = vmatpush1.msra.mxu0 0.0
        %622 = vmatprep.subr.mxu0 0.0
        %623 = vmatpush1.msra.mxu0 0.0
        %624 = vmatprep.subr.mxu0 0.0
        %625 = vmatpush1.msra.mxu0 0.0
        %626 = vmatprep.subr.mxu0 0.0
        %627 = vmatpush1.msra.mxu0 0.0
        %628 = vmatprep.subr.mxu0 0.0
        %629 = vmatpush1.msra.mxu0 0.0
        %630 = vmatprep.subr.mxu0 0.0
        %631 = vmatpush1.msra.mxu0 0.0
        %632 = vmatprep.subr.mxu0 0.0
        %633 = vmatpush1.msra.mxu0 0.0
        %634 = vmatprep.subr.mxu0 0.0
        %635 = vmatpush1.msra.mxu0 0.0
        %636 = vmatprep.subr.mxu0 0.0
        %637 = vmatpush1.msra.mxu0 0.0
        %638 = vmatprep.subr.mxu0 0.0
        %639 = vmatpush1.msra.mxu0 0.0
        %640 = vmatprep.subr.mxu0 0.0
        %641 = vmatpush1.msra.mxu0 0.0
        %642 = vmatprep.subr.mxu0 0.0
        %643 = vmatpush1.msra.mxu0 0.0
        %644 = vmatprep.subr.mxu0 0.0
        %645 = vmatpush1.msra.mxu0 0.0
        %646 = vmatprep.subr.mxu0 0.0
        %647 = vmatpush1.msra.mxu0 0.0
        %648 = vmatprep.subr.mxu0 0.0
        %649 = vmatpush1.msra.mxu0 0.0
        %650 = vmatprep.subr.mxu0 0.0
        %651 = vmatpush1.msra.mxu0 0.0
        %652 = vmatprep.subr.mxu0 0.0
        %653 = vmatpush1.msra.mxu0 0.0
        %654 = vmatprep.subr.mxu0 0.0
        %655 = vmatpush1.msra.mxu0 0.0
        %656 = vmatprep.subr.mxu0 0.0
        %657 = vmatpush1.msra.mxu0 0.0
        %658 = vmatprep.subr.mxu0 0.0
        %659 = vmatpush1.msra.mxu0 0.0
        %660 = vmatprep.subr.mxu0 0.0
        %661 = vmatpush1.msra.mxu0 0.0
        %662 = vmatprep.mubr.f32.mxu0 0.0
        %663 = vmatmul.mubr.f32.gmra.mrb[0].mxu0 %v596
        %v664 = vpop.f32.mrb[0].mxu0
        %v665 = vadd.f32 0.0, %v664
        %v666 = vpop.f32.mrb[0].mxu0
        %667 = vdwg.mxu0
        %668 = vrot.lane.b32.xlu0 %v424, 120
        %v669 = vpop.permute.xlu0 %668
        %670 = vrot.lane.b32.xlu0 %v501, 120
        %v671 = vpop.permute.xlu0 %670
        %v672 = vsel %vm504, %v669, 0
        %v674 = vsel %vm504, %v671, 0
        %676 = vmatprep.subr.mxu0 0.0
        %677 = vmatpush1.xpose.msra.mxu0 %v674
        %678 = vmatprep.subr.mxu0 0.0
        %679 = vmatpush1.xpose.msra.mxu0 0.0
        %680 = vmatprep.subr.mxu0 0.0
        %681 = vmatpush1.xpose.msra.mxu0 0.0
        %682 = vmatprep.subr.mxu0 0.0
        %683 = vmatpush1.xpose.msra.mxu0 0.0
        %684 = vmatprep.subr.mxu0 0.0
        %685 = vmatpush1.xpose.msra.mxu0 0.0
        %686 = vmatprep.subr.mxu0 0.0
        %687 = vmatpush1.xpose.msra.mxu0 0.0
        %688 = vmatprep.subr.mxu0 0.0
        %689 = vmatpush1.xpose.msra.mxu0 0.0
        %690 = vmatprep.subr.mxu0 0.0
        %691 = vmatpush1.xpose.msra.mxu0 0.0
        %692 = vmatprep.subr.mxu0 0.0
        %693 = vmatpush1.xpose.msra.mxu0 0.0
        %694 = vmatprep.subr.mxu0 0.0
        %695 = vmatpush1.xpose.msra.mxu0 0.0
        %696 = vmatprep.subr.mxu0 0.0
        %697 = vmatpush1.xpose.msra.mxu0 0.0
        %698 = vmatprep.subr.mxu0 0.0
        %699 = vmatpush1.xpose.msra.mxu0 0.0
        %700 = vmatprep.subr.mxu0 0.0
        %701 = vmatpush1.xpose.msra.mxu0 0.0
        %702 = vmatprep.subr.mxu0 0.0
        %703 = vmatpush1.xpose.msra.mxu0 0.0
        %704 = vmatprep.subr.mxu0 0.0
        %705 = vmatpush1.xpose.msra.mxu0 0.0
        %706 = vmatprep.subr.mxu0 0.0
        %707 = vmatpush1.xpose.msra.mxu0 0.0
        %708 = vmatprep.subr.mxu0 0.0
        %709 = vmatpush1.xpose.msra.mxu0 0.0
        %710 = vmatprep.subr.mxu0 0.0
        %711 = vmatpush1.xpose.msra.mxu0 0.0
        %712 = vmatprep.subr.mxu0 0.0
        %713 = vmatpush1.xpose.msra.mxu0 0.0
        %714 = vmatprep.subr.mxu0 0.0
        %715 = vmatpush1.xpose.msra.mxu0 0.0
        %716 = vmatprep.subr.mxu0 0.0
        %717 = vmatpush1.xpose.msra.mxu0 0.0
        %718 = vmatprep.subr.mxu0 0.0
        %719 = vmatpush1.xpose.msra.mxu0 0.0
        %720 = vmatprep.subr.mxu0 0.0
        %721 = vmatpush1.xpose.msra.mxu0 0.0
        %722 = vmatprep.subr.mxu0 0.0
        %723 = vmatpush1.xpose.msra.mxu0 0.0
        %724 = vmatprep.subr.mxu0 0.0
        %725 = vmatpush1.xpose.msra.mxu0 0.0
        %726 = vmatprep.subr.mxu0 0.0
        %727 = vmatpush1.xpose.msra.mxu0 0.0
        %728 = vmatprep.subr.mxu0 0.0
        %729 = vmatpush1.xpose.msra.mxu0 0.0
        %730 = vmatprep.subr.mxu0 0.0
        %731 = vmatpush1.xpose.msra.mxu0 0.0
        %732 = vmatprep.subr.mxu0 0.0
        %733 = vmatpush1.xpose.msra.mxu0 0.0
        %734 = vmatprep.subr.mxu0 0.0
        %735 = vmatpush1.xpose.msra.mxu0 0.0
        %736 = vmatprep.subr.mxu0 0.0
        %737 = vmatpush1.xpose.msra.mxu0 0.0
        %738 = vmatprep.subr.mxu0 0.0
        %739 = vmatpush1.xpose.msra.mxu0 0.0
        %740 = vmatprep.mubr.f32.mxu0 0.0
        %741 = vmatmul.mubr.f32.gmra.mrb[0].mxu0 %v672
        %v742 = vpop.f32.mrb[0].mxu0
        %v743 = vadd.f32 0.0, %v742
        %v744 = vpop.f32.mrb[0].mxu0
        %745 = vdwg.mxu0
        %v746 = vsel %vm504, %v743, -inf
        %747 = vmax.xlane.f32.xlu0 %v746
        %v748 = vpop.xlane.xlu0 %747
        %v749 = vsub.f32 %v743, %v748
        %v750 = vmul.f32 %v749, 1.442695
        %v751 = vpow.pop %v750
        %v752 = vsel %vm504, %v751, 0.0
        %753 = vadd.xlane.f32.xlu0 %v752
        %v754 = vpop.xlane.xlu0 %753
        %v755 = vrcp.pop %v754
        %v756 = vmul.f32 %v751, %v755
        %757 = vrot.lane.b32.xlu0 %v501, 88
        %v758 = vpop.permute.xlu0 %757
        %v761 = vsel %vm504, %v756, 0
        %763 = vmatprep.subr.mxu0 0.0
        %764 = vmatpush1.msra.mxu0 %v758
        %765 = vmatprep.subr.mxu0 0.0
        %766 = vmatpush1.msra.mxu0 0.0
        %767 = vmatprep.subr.mxu0 0.0
        %768 = vmatpush1.msra.mxu0 0.0
        %769 = vmatprep.subr.mxu0 0.0
        %770 = vmatpush1.msra.mxu0 0.0
        %771 = vmatprep.subr.mxu0 0.0
        %772 = vmatpush1.msra.mxu0 0.0
        %773 = vmatprep.subr.mxu0 0.0
        %774 = vmatpush1.msra.mxu0 0.0
        %775 = vmatprep.subr.mxu0 0.0
        %776 = vmatpush1.msra.mxu0 0.0
        %777 = vmatprep.subr.mxu0 0.0
        %778 = vmatpush1.msra.mxu0 0.0
        %779 = vmatprep.subr.mxu0 0.0
        %780 = vmatpush1.msra.mxu0 0.0
        %781 = vmatprep.subr.mxu0 0.0
        %782 = vmatpush1.msra.mxu0 0.0
        %783 = vmatprep.subr.mxu0 0.0
        %784 = vmatpush1.msra.mxu0 0.0
        %785 = vmatprep.subr.mxu0 0.0
        %786 = vmatpush1.msra.mxu0 0.0
        %787 = vmatprep.subr.mxu0 0.0
        %788 = vmatpush1.msra.mxu0 0.0
        %789 = vmatprep.subr.mxu0 0.0
        %790 = vmatpush1.msra.mxu0 0.0
        %791 = vmatprep.subr.mxu0 0.0
        %792 = vmatpush1.msra.mxu0 0.0
        %793 = vmatprep.subr.mxu0 0.0
        %794 = vmatpush1.msra.mxu0 0.0
        %795 = vmatprep.subr.mxu0 0.0
        %796 = vmatpush1.msra.mxu0 0.0
        %797 = vmatprep.subr.mxu0 0.0
        %798 = vmatpush1.msra.mxu0 0.0
        %799 = vmatprep.subr.mxu0 0.0
        %800 = vmatpush1.msra.mxu0 0.0
        %801 = vmatprep.subr.mxu0 0.0
        %802 = vmatpush1.msra.mxu0 0.0
        %803 = vmatprep.subr.mxu0 0.0
        %804 = vmatpush1.msra.mxu0 0.0
        %805 = vmatprep.subr.mxu0 0.0
        %806 = vmatpush1.msra.mxu0 0.0
        %807 = vmatprep.subr.mxu0 0.0
        %808 = vmatpush1.msra.mxu0 0.0
        %809 = vmatprep.subr.mxu0 0.0
        %810 = vmatpush1.msra.mxu0 0.0
        %811 = vmatprep.subr.mxu0 0.0
        %812 = vmatpush1.msra.mxu0 0.0
        %813 = vmatprep.subr.mxu0 0.0
        %814 = vmatpush1.msra.mxu0 0.0
        %815 = vmatprep.subr.mxu0 0.0
        %816 = vmatpush1.msra.mxu0 0.0
        %817 = vmatprep.subr.mxu0 0.0
        %818 = vmatpush1.msra.mxu0 0.0
        %819 = vmatprep.subr.mxu0 0.0
        %820 = vmatpush1.msra.mxu0 0.0
        %821 = vmatprep.subr.mxu0 0.0
        %822 = vmatpush1.msra.mxu0 0.0
        %823 = vmatprep.subr.mxu0 0.0
        %824 = vmatpush1.msra.mxu0 0.0
        %825 = vmatprep.subr.mxu0 0.0
        %826 = vmatpush1.msra.mxu0 0.0
        %827 = vmatprep.mubr.f32.mxu0 0.0
        %828 = vmatmul.mubr.f32.gmra.mrb[0].mxu0 %v761
        %v829 = vpop.f32.mrb[0].mxu0
        %v830 = vadd.f32 0.0, %v829
        %v831 = vpop.f32.mrb[0].mxu0
        %832 = vdwg.mxu0
        %833 = vrot.lane.b32.xlu0 %v424, 112
        %v834 = vpop.permute.xlu0 %833
        %835 = vrot.lane.b32.xlu0 %v501, 112
        %v836 = vpop.permute.xlu0 %835
        %v837 = vsel %vm504, %v834, 0
        %v839 = vsel %vm504, %v836, 0
        %841 = vmatprep.subr.mxu0 0.0
        %842 = vmatpush1.xpose.msra.mxu0 %v839
        %843 = vmatprep.subr.mxu0 0.0
        %844 = vmatpush1.xpose.msra.mxu0 0.0
        %845 = vmatprep.subr.mxu0 0.0
        %846 = vmatpush1.xpose.msra.mxu0 0.0
        %847 = vmatprep.subr.mxu0 0.0
        %848 = vmatpush1.xpose.msra.mxu0 0.0
        %849 = vmatprep.subr.mxu0 0.0
        %850 = vmatpush1.xpose.msra.mxu0 0.0
        %851 = vmatprep.subr.mxu0 0.0
        %852 = vmatpush1.xpose.msra.mxu0 0.0
        %853 = vmatprep.subr.mxu0 0.0
        %854 = vmatpush1.xpose.msra.mxu0 0.0
        %855 = vmatprep.subr.mxu0 0.0
        %856 = vmatpush1.xpose.msra.mxu0 0.0
        %857 = vmatprep.subr.mxu0 0.0
        %858 = vmatpush1.xpose.msra.mxu0 0.0
        %859 = vmatprep.subr.mxu0 0.0
        %860 = vmatpush1.xpose.msra.mxu0 0.0
        %861 = vmatprep.subr.mxu0 0.0
        %862 = vmatpush1.xpose.msra.mxu0 0.0
        %863 = vmatprep.subr.mxu0 0.0
        %864 = vmatpush1.xpose.msra.mxu0 0.0
        %865 = vmatprep.subr.mxu0 0.0
        %866 = vmatpush1.xpose.msra.mxu0 0.0
        %867 = vmatprep.subr.mxu0 0.0
        %868 = vmatpush1.xpose.msra.mxu0 0.0
        %869 = vmatprep.subr.mxu0 0.0
        %870 = vmatpush1.xpose.msra.mxu0 0.0
        %871 = vmatprep.subr.mxu0 0.0
        %872 = vmatpush1.xpose.msra.mxu0 0.0
        %873 = vmatprep.subr.mxu0 0.0
        %874 = vmatpush1.xpose.msra.mxu0 0.0
        %875 = vmatprep.subr.mxu0 0.0
        %876 = vmatpush1.xpose.msra.mxu0 0.0
        %877 = vmatprep.subr.mxu0 0.0
        %878 = vmatpush1.xpose.msra.mxu0 0.0
        %879 = vmatprep.subr.mxu0 0.0
        %880 = vmatpush1.xpose.msra.mxu0 0.0
        %881 = vmatprep.subr.mxu0 0.0
        %882 = vmatpush1.xpose.msra.mxu0 0.0
        %883 = vmatprep.subr.mxu0 0.0
        %884 = vmatpush1.xpose.msra.mxu0 0.0
        %885 = vmatprep.subr.mxu0 0.0
        %886 = vmatpush1.xpose.msra.mxu0 0.0
        %887 = vmatprep.subr.mxu0 0.0
        %888 = vmatpush1.xpose.msra.mxu0 0.0
        %889 = vmatprep.subr.mxu0 0.0
        %890 = vmatpush1.xpose.msra.mxu0 0.0
        %891 = vmatprep.subr.mxu0 0.0
        %892 = vmatpush1.xpose.msra.mxu0 0.0
        %893 = vmatprep.subr.mxu0 0.0
        %894 = vmatpush1.xpose.msra.mxu0 0.0
        %895 = vmatprep.subr.mxu0 0.0
        %896 = vmatpush1.xpose.msra.mxu0 0.0
        %897 = vmatprep.subr.mxu0 0.0
        %898 = vmatpush1.xpose.msra.mxu0 0.0
        %899 = vmatprep.subr.mxu0 0.0
        %900 = vmatpush1.xpose.msra.mxu0 0.0
        %901 = vmatprep.subr.mxu0 0.0
        %902 = vmatpush1.xpose.msra.mxu0 0.0
        %903 = vmatprep.subr.mxu0 0.0
        %904 = vmatpush1.xpose.msra.mxu0 0.0
        %905 = vmatprep.mubr.f32.mxu0 0.0
        %906 = vmatmul.mubr.f32.gmra.mrb[0].mxu0 %v837
        %v907 = vpop.f32.mrb[0].mxu0
        %v908 = vadd.f32 0.0, %v907
        %v909 = vpop.f32.mrb[0].mxu0
        %910 = vdwg.mxu0
        %v911 = vsel %vm504, %v908, -inf
        %912 = vmax.xlane.f32.xlu0 %v911
        %v913 = vpop.xlane.xlu0 %912
        %v914 = vsub.f32 %v908, %v913
        %v915 = vmul.f32 %v914, 1.442695
        %v916 = vpow.pop %v915
        %v917 = vsel %vm504, %v916, 0.0
        %918 = vadd.xlane.f32.xlu0 %v917
        %v919 = vpop.xlane.xlu0 %918
        %v920 = vrcp.pop %v919
        %v921 = vmul.f32 %v916, %v920
        %922 = vrot.lane.b32.xlu0 %v501, 80
        %v923 = vpop.permute.xlu0 %922
        %v926 = vsel %vm504, %v921, 0
        %928 = vmatprep.subr.mxu0 0.0
        %929 = vmatpush1.msra.mxu0 %v923
        %930 = vmatprep.subr.mxu0 0.0
        %931 = vmatpush1.msra.mxu0 0.0
        %932 = vmatprep.subr.mxu0 0.0
        %933 = vmatpush1.msra.mxu0 0.0
        %934 = vmatprep.subr.mxu0 0.0
        %935 = vmatpush1.msra.mxu0 0.0
        %936 = vmatprep.subr.mxu0 0.0
        %937 = vmatpush1.msra.mxu0 0.0
        %938 = vmatprep.subr.mxu0 0.0
        %939 = vmatpush1.msra.mxu0 0.0
        %940 = vmatprep.subr.mxu0 0.0
        %941 = vmatpush1.msra.mxu0 0.0
        %942 = vmatprep.subr.mxu0 0.0
        %943 = vmatpush1.msra.mxu0 0.0
        %944 = vmatprep.subr.mxu0 0.0
        %945 = vmatpush1.msra.mxu0 0.0
        %946 = vmatprep.subr.mxu0 0.0
        %947 = vmatpush1.msra.mxu0 0.0
        %948 = vmatprep.subr.mxu0 0.0
        %949 = vmatpush1.msra.mxu0 0.0
        %950 = vmatprep.subr.mxu0 0.0
        %951 = vmatpush1.msra.mxu0 0.0
        %952 = vmatprep.subr.mxu0 0.0
        %953 = vmatpush1.msra.mxu0 0.0
        %954 = vmatprep.subr.mxu0 0.0
        %955 = vmatpush1.msra.mxu0 0.0
        %956 = vmatprep.subr.mxu0 0.0
        %957 = vmatpush1.msra.mxu0 0.0
        %958 = vmatprep.subr.mxu0 0.0
        %959 = vmatpush1.msra.mxu0 0.0
        %960 = vmatprep.subr.mxu0 0.0
        %961 = vmatpush1.msra.mxu0 0.0
        %962 = vmatprep.subr.mxu0 0.0
        %963 = vmatpush1.msra.mxu0 0.0
        %964 = vmatprep.subr.mxu0 0.0
        %965 = vmatpush1.msra.mxu0 0.0
        %966 = vmatprep.subr.mxu0 0.0
        %967 = vmatpush1.msra.mxu0 0.0
        %968 = vmatprep.subr.mxu0 0.0
        %969 = vmatpush1.msra.mxu0 0.0
        %970 = vmatprep.subr.mxu0 0.0
        %971 = vmatpush1.msra.mxu0 0.0
        %972 = vmatprep.subr.mxu0 0.0
        %973 = vmatpush1.msra.mxu0 0.0
        %974 = vmatprep.subr.mxu0 0.0
        %975 = vmatpush1.msra.mxu0 0.0
        %976 = vmatprep.subr.mxu0 0.0
        %977 = vmatpush1.msra.mxu0 0.0
        %978 = vmatprep.subr.mxu0 0.0
        %979 = vmatpush1.msra.mxu0 0.0
        %980 = vmatprep.subr.mxu0 0.0
        %981 = vmatpush1.msra.mxu0 0.0
        %982 = vmatprep.subr.mxu0 0.0
        %983 = vmatpush1.msra.mxu0 0.0
        %984 = vmatprep.subr.mxu0 0.0
        %985 = vmatpush1.msra.mxu0 0.0
        %986 = vmatprep.subr.mxu0 0.0
        %987 = vmatpush1.msra.mxu0 0.0
        %988 = vmatprep.subr.mxu0 0.0
        %989 = vmatpush1.msra.mxu0 0.0
        %990 = vmatprep.subr.mxu0 0.0
        %991 = vmatpush1.msra.mxu0 0.0
        %992 = vmatprep.mubr.f32.mxu0 0.0
        %993 = vmatmul.mubr.f32.gmra.mrb[0].mxu0 %v926
        %v994 = vpop.f32.mrb[0].mxu0
        %v995 = vadd.f32 0.0, %v994
        %v996 = vpop.f32.mrb[0].mxu0
        %997 = vdwg.mxu0
        %998 = vrot.lane.b32.xlu0 %v424, 104
        %v999 = vpop.permute.xlu0 %998
        %1000 = vrot.lane.b32.xlu0 %v501, 104
        %v1001 = vpop.permute.xlu0 %1000
        %v1002 = vsel %vm504, %v999, 0
        %v1004 = vsel %vm504, %v1001, 0
        %1006 = vmatprep.subr.mxu0 0.0
        %1007 = vmatpush1.xpose.msra.mxu0 %v1004
        %1008 = vmatprep.subr.mxu0 0.0
        %1009 = vmatpush1.xpose.msra.mxu0 0.0
        %1010 = vmatprep.subr.mxu0 0.0
        %1011 = vmatpush1.xpose.msra.mxu0 0.0
        %1012 = vmatprep.subr.mxu0 0.0
        %1013 = vmatpush1.xpose.msra.mxu0 0.0
        %1014 = vmatprep.subr.mxu0 0.0
        %1015 = vmatpush1.xpose.msra.mxu0 0.0
        %1016 = vmatprep.subr.mxu0 0.0
        %1017 = vmatpush1.xpose.msra.mxu0 0.0
        %1018 = vmatprep.subr.mxu0 0.0
        %1019 = vmatpush1.xpose.msra.mxu0 0.0
        %1020 = vmatprep.subr.mxu0 0.0
        %1021 = vmatpush1.xpose.msra.mxu0 0.0
        %1022 = vmatprep.subr.mxu0 0.0
        %1023 = vmatpush1.xpose.msra.mxu0 0.0
        %1024 = vmatprep.subr.mxu0 0.0
        %1025 = vmatpush1.xpose.msra.mxu0 0.0
        %1026 = vmatprep.subr.mxu0 0.0
        %1027 = vmatpush1.xpose.msra.mxu0 0.0
        %1028 = vmatprep.subr.mxu0 0.0
        %1029 = vmatpush1.xpose.msra.mxu0 0.0
        %1030 = vmatprep.subr.mxu0 0.0
        %1031 = vmatpush1.xpose.msra.mxu0 0.0
        %1032 = vmatprep.subr.mxu0 0.0
        %1033 = vmatpush1.xpose.msra.mxu0 0.0
        %1034 = vmatprep.subr.mxu0 0.0
        %1035 = vmatpush1.xpose.msra.mxu0 0.0
        %1036 = vmatprep.subr.mxu0 0.0
        %1037 = vmatpush1.xpose.msra.mxu0 0.0
        %1038 = vmatprep.subr.mxu0 0.0
        %1039 = vmatpush1.xpose.msra.mxu0 0.0
        %1040 = vmatprep.subr.mxu0 0.0
        %1041 = vmatpush1.xpose.msra.mxu0 0.0
        %1042 = vmatprep.subr.mxu0 0.0
        %1043 = vmatpush1.xpose.msra.mxu0 0.0
        %1044 = vmatprep.subr.mxu0 0.0
        %1045 = vmatpush1.xpose.msra.mxu0 0.0
        %1046 = vmatprep.subr.mxu0 0.0
        %1047 = vmatpush1.xpose.msra.mxu0 0.0
        %1048 = vmatprep.subr.mxu0 0.0
        %1049 = vmatpush1.xpose.msra.mxu0 0.0
        %1050 = vmatprep.subr.mxu0 0.0
        %1051 = vmatpush1.xpose.msra.mxu0 0.0
        %1052 = vmatprep.subr.mxu0 0.0
        %1053 = vmatpush1.xpose.msra.mxu0 0.0
        %1054 = vmatprep.subr.mxu0 0.0
        %1055 = vmatpush1.xpose.msra.mxu0 0.0
        %1056 = vmatprep.subr.mxu0 0.0
        %1057 = vmatpush1.xpose.msra.mxu0 0.0
        %1058 = vmatprep.subr.mxu0 0.0
        %1059 = vmatpush1.xpose.msra.mxu0 0.0
        %1060 = vmatprep.subr.mxu0 0.0
        %1061 = vmatpush1.xpose.msra.mxu0 0.0
        %1062 = vmatprep.subr.mxu0 0.0
        %1063 = vmatpush1.xpose.msra.mxu0 0.0
        %1064 = vmatprep.subr.mxu0 0.0
        %1065 = vmatpush1.xpose.msra.mxu0 0.0
        %1066 = vmatprep.subr.mxu0 0.0
        %1067 = vmatpush1.xpose.msra.mxu0 0.0
        %1068 = vmatprep.subr.mxu0 0.0
        %1069 = vmatpush1.xpose.msra.mxu0 0.0
        %1070 = vmatprep.mubr.f32.mxu0 0.0
        %1071 = vmatmul.mubr.f32.gmra.mrb[0].mxu0 %v1002
        %v1072 = vpop.f32.mrb[0].mxu0
        %v1073 = vadd.f32 0.0, %v1072
        %v1074 = vpop.f32.mrb[0].mxu0
        %1075 = vdwg.mxu0
        %v1076 = vsel %vm504, %v1073, -inf
        %1077 = vmax.xlane.f32.xlu0 %v1076
        %v1078 = vpop.xlane.xlu0 %1077
        %v1079 = vsub.f32 %v1073, %v1078
        %v1080 = vmul.f32 %v1079, 1.442695
        %v1081 = vpow.pop %v1080
        %v1082 = vsel %vm504, %v1081, 0.0
        %1083 = vadd.xlane.f32.xlu0 %v1082
        %v1084 = vpop.xlane.xlu0 %1083
        %v1085 = vrcp.pop %v1084
        %v1086 = vmul.f32 %v1081, %v1085
        %1087 = vrot.lane.b32.xlu0 %v501, 72
        %v1088 = vpop.permute.xlu0 %1087
        %v1091 = vsel %vm504, %v1086, 0
        %1093 = vmatprep.subr.mxu0 0.0
        %1094 = vmatpush1.msra.mxu0 %v1088
        %1095 = vmatprep.subr.mxu0 0.0
        %1096 = vmatpush1.msra.mxu0 0.0
        %1097 = vmatprep.subr.mxu0 0.0
        %1098 = vmatpush1.msra.mxu0 0.0
        %1099 = vmatprep.subr.mxu0 0.0
        %1100 = vmatpush1.msra.mxu0 0.0
        %1101 = vmatprep.subr.mxu0 0.0
        %1102 = vmatpush1.msra.mxu0 0.0
        %1103 = vmatprep.subr.mxu0 0.0
        %1104 = vmatpush1.msra.mxu0 0.0
        %1105 = vmatprep.subr.mxu0 0.0
        %1106 = vmatpush1.msra.mxu0 0.0
        %1107 = vmatprep.subr.mxu0 0.0
        %1108 = vmatpush1.msra.mxu0 0.0
        %1109 = vmatprep.subr.mxu0 0.0
        %1110 = vmatpush1.msra.mxu0 0.0
        %1111 = vmatprep.subr.mxu0 0.0
        %1112 = vmatpush1.msra.mxu0 0.0
        %1113 = vmatprep.subr.mxu0 0.0
        %1114 = vmatpush1.msra.mxu0 0.0
        %1115 = vmatprep.subr.mxu0 0.0
        %1116 = vmatpush1.msra.mxu0 0.0
        %1117 = vmatprep.subr.mxu0 0.0
        %1118 = vmatpush1.msra.mxu0 0.0
        %1119 = vmatprep.subr.mxu0 0.0
        %1120 = vmatpush1.msra.mxu0 0.0
        %1121 = vmatprep.subr.mxu0 0.0
        %1122 = vmatpush1.msra.mxu0 0.0
        %1123 = vmatprep.subr.mxu0 0.0
        %1124 = vmatpush1.msra.mxu0 0.0
        %1125 = vmatprep.subr.mxu0 0.0
        %1126 = vmatpush1.msra.mxu0 0.0
        %1127 = vmatprep.subr.mxu0 0.0
        %1128 = vmatpush1.msra.mxu0 0.0
        %1129 = vmatprep.subr.mxu0 0.0
        %1130 = vmatpush1.msra.mxu0 0.0
        %1131 = vmatprep.subr.mxu0 0.0
        %1132 = vmatpush1.msra.mxu0 0.0
        %1133 = vmatprep.subr.mxu0 0.0
        %1134 = vmatpush1.msra.mxu0 0.0
        %1135 = vmatprep.subr.mxu0 0.0
        %1136 = vmatpush1.msra.mxu0 0.0
        %1137 = vmatprep.subr.mxu0 0.0
        %1138 = vmatpush1.msra.mxu0 0.0
        %1139 = vmatprep.subr.mxu0 0.0
        %1140 = vmatpush1.msra.mxu0 0.0
        %1141 = vmatprep.subr.mxu0 0.0
        %1142 = vmatpush1.msra.mxu0 0.0
        %1143 = vmatprep.subr.mxu0 0.0
        %1144 = vmatpush1.msra.mxu0 0.0
        %1145 = vmatprep.subr.mxu0 0.0
        %1146 = vmatpush1.msra.mxu0 0.0
        %1147 = vmatprep.subr.mxu0 0.0
        %1148 = vmatpush1.msra.mxu0 0.0
        %1149 = vmatprep.subr.mxu0 0.0
        %1150 = vmatpush1.msra.mxu0 0.0
        %1151 = vmatprep.subr.mxu0 0.0
        %1152 = vmatpush1.msra.mxu0 0.0
        %1153 = vmatprep.subr.mxu0 0.0
        %1154 = vmatpush1.msra.mxu0 0.0
        %1155 = vmatprep.subr.mxu0 0.0
        %1156 = vmatpush1.msra.mxu0 0.0
        %1157 = vmatprep.mubr.f32.mxu0 0.0
        %1158 = vmatmul.mubr.f32.gmra.mrb[0].mxu0 %v1091
        %v1159 = vpop.f32.mrb[0].mxu0
        %v1160 = vadd.f32 0.0, %v1159
        %v1161 = vpop.f32.mrb[0].mxu0
        %1162 = vdwg.mxu0
        %1164 = vrot.lane.b32.xlu0 %v830, 8
        %v1165 = vpop.permute.xlu0 %1164
        %1168 = vrot.lane.b32.xlu0 %v995, 16
        %v1169 = vpop.permute.xlu0 %1168
        %1172 = vrot.lane.b32.xlu0 %v1160, 24
        %v1173 = vpop.permute.xlu0 %1172
        %v1175 = vsel %vm504, %v665, %v1165
        %vm1176 = vcmask 130048
        %v1177 = vsel %vm1176, %v1175, %v1169
        %vm1178 = vcmask 195584
        %v1179 = vsel %vm1178, %v1177, %v1173
        %v1180 = vld [vmem:[#allocation10] sm:$0xff]
        %v1181 = vld [vmem:[#allocation10 + $0x8] sm:$0xff]
        %v1182 = vld [vmem:[#allocation10 + $0x10] sm:$0xff]
        %v1183 = vld [vmem:[#allocation10 + $0x18] sm:$0xff]
        %v1184 = vld [vmem:[%s5] sm:$0x1]
        %v1186 = vlaneseq
        %v1187 = vshrl.u32 %v1186, 7
        %v1188 = vsub.s32 0, %v1187
        %v1189 = vrot.slane %v1184, %v1188
        %v1192 = vsel %vm353, %v1179, 0
        %1194 = vmatprep.subr.mxu0 0.0
        %1195 = vmatpush1.msra.mxu0 %v1180
        %1196 = vmatprep.subr.mxu0 0.0
        %1197 = vmatpush1.msra.mxu0 %v1181
        %1198 = vmatprep.subr.mxu0 0.0
        %1199 = vmatpush1.msra.mxu0 %v1182
        %1200 = vmatprep.subr.mxu0 0.0
        %1201 = vmatpush1.msra.mxu0 %v1183
        %1202 = vmatprep.subr.mxu0 0.0
        %1203 = vmatpush1.msra.mxu0 0.0
        %1204 = vmatprep.subr.mxu0 0.0
        %1205 = vmatpush1.msra.mxu0 0.0
        %1206 = vmatprep.subr.mxu0 0.0
        %1207 = vmatpush1.msra.mxu0 0.0
        %1208 = vmatprep.subr.mxu0 0.0
        %1209 = vmatpush1.msra.mxu0 0.0
        %1210 = vmatprep.subr.mxu0 0.0
        %1211 = vmatpush1.msra.mxu0 0.0
        %1212 = vmatprep.subr.mxu0 0.0
        %1213 = vmatpush1.msra.mxu0 0.0
        %1214 = vmatprep.subr.mxu0 0.0
        %1215 = vmatpush1.msra.mxu0 0.0
        %1216 = vmatprep.subr.mxu0 0.0
        %1217 = vmatpush1.msra.mxu0 0.0
        %1218 = vmatprep.subr.mxu0 0.0
        %1219 = vmatpush1.msra.mxu0 0.0
        %1220 = vmatprep.subr.mxu0 0.0
        %1221 = vmatpush1.msra.mxu0 0.0
        %1222 = vmatprep.subr.mxu0 0.0
        %1223 = vmatpush1.msra.mxu0 0.0
        %1224 = vmatprep.subr.mxu0 0.0
        %1225 = vmatpush1.msra.mxu0 0.0
        %1226 = vmatprep.subr.mxu0 0.0
        %1227 = vmatpush1.msra.mxu0 0.0
        %1228 = vmatprep.subr.mxu0 0.0
        %1229 = vmatpush1.msra.mxu0 0.0
        %1230 = vmatprep.subr.mxu0 0.0
        %1231 = vmatpush1.msra.mxu0 0.0
        %1232 = vmatprep.subr.mxu0 0.0
        %1233 = vmatpush1.msra.mxu0 0.0
        %1234 = vmatprep.subr.mxu0 0.0
        %1235 = vmatpush1.msra.mxu0 0.0
        %1236 = vmatprep.subr.mxu0 0.0
        %1237 = vmatpush1.msra.mxu0 0.0
        %1238 = vmatprep.subr.mxu0 0.0
        %1239 = vmatpush1.msra.mxu0 0.0
        %1240 = vmatprep.subr.mxu0 0.0
        %1241 = vmatpush1.msra.mxu0 0.0
        %1242 = vmatprep.subr.mxu0 0.0
        %1243 = vmatpush1.msra.mxu0 0.0
        %1244 = vmatprep.subr.mxu0 0.0
        %1245 = vmatpush1.msra.mxu0 0.0
        %1246 = vmatprep.subr.mxu0 0.0
        %1247 = vmatpush1.msra.mxu0 0.0
        %1248 = vmatprep.subr.mxu0 0.0
        %1249 = vmatpush1.msra.mxu0 0.0
        %1250 = vmatprep.subr.mxu0 0.0
        %1251 = vmatpush1.msra.mxu0 0.0
        %1252 = vmatprep.subr.mxu0 0.0
        %1253 = vmatpush1.msra.mxu0 0.0
        %1254 = vmatprep.subr.mxu0 0.0
        %1255 = vmatpush1.msra.mxu0 0.0
        %1256 = vmatprep.subr.mxu0 0.0
        %1257 = vmatpush1.msra.mxu0 0.0
        %1258 = vmatprep.mubr.f32.mxu0 0.0
        %1259 = vmatmul.mubr.f32.gmra.mrb[0].mxu0 %v1192
        %v1260 = vpop.f32.mrb[0].mxu0
        %v1261 = vadd.f32 %v1189, %v1260
        %v1262 = vpop.f32.mrb[0].mxu0
        %1263 = vdwg.mxu0
        %1264 = vst.msk [vmem:[%s346] sm:$0xff] %vm353, %v1261
        %s1265 = sand.u32 %s171, 1
        %s1266 = scalar_lea.sflag [#allocation4], %s1265
        %s1267 = sand.u32 %s171, 1
        %s1268 = smul.addr %s1267, 8
        %s1269 = scalar_lea.vmem [#allocation11], %s1268
        // Predicated region
        $region65: #{tpu_custom_call.1} parent=43 // pred_check
          %p1270 = pneg %p181
        $region66: #{tpu_custom_call.1} parent=43 // pred_check_branch
          %1272 = sbr.rel (%p1270) target = $region68
        $region67: #{tpu_custom_call.1} parent=43 // pred_region
          %s1274 = ssub.s32 128, 128
          %1275 = vsyncadd %s1266, %s1274
          %s1276 = smul.addr %s27, 128
          %s1277 = scalar_lea.hbm %s6, %s1276
          %s1279 = sshll.u32 %s1269, 4
          %s1280 = int_to_ptr.vmem [resolvable:$true] %s1279
          %1282 = dma.vmem_to_hbm [thread:$0]  %s1280, 128, %s1277, %s1266
        $region68: #{tpu_custom_call.1} parent=43 // pred_fallthru
          _
      $region44: #{tpu_custom_call.1} parent=5 // pred_fallthru
        _
      %p1283 = scmp.le.s32.totalorder 2, %s22
      // Predicated region
      $region69: #{tpu_custom_call.1} parent=5 // pred_check
        %p1284 = pneg %p1283
      $region70: #{tpu_custom_call.1} parent=5 // pred_check_branch
        %1286 = sbr.rel (%p1284) target = $region72
      $region71: #{tpu_custom_call.1} parent=5 // pred_region
        %s1287 = ssub.s32 %s22, 2
        // Predicated region
        $region73: #{tpu_custom_call.1} parent=71 // pred_check
          %p1288 = pneg %p187
        $region74: #{tpu_custom_call.1} parent=71 // pred_check_branch
          %1290 = sbr.rel (%p1288) target = $region76
        $region75: #{tpu_custom_call.1} parent=71 // pred_region
          %s1291 = sand.u32 %s172, 1
          %s1292 = scalar_lea.sflag [#allocation4], %s1291
          %s1293 = sand.u32 %s172, 1
          %s1294 = smul.addr %s1293, 8
          %s1295 = scalar_lea.vmem [#allocation11], %s1294
          %1296 = dma.done %s1292, 128
        $region76: #{tpu_custom_call.1} parent=71 // pred_fallthru
          _
      $region72: #{tpu_custom_call.1} parent=5 // pred_fallthru
        _
    $region6: #{tpu_custom_call.1} parent=1 // loop_footer
      %s26 = sadd.s32 1, %s22
    $region7: #{tpu_custom_call.1} parent=1 // loop_footer_branch
      %21 = sbr.rel target = $region3
    $region8: #{tpu_custom_call.1} parent=1 // loop_exit
      _
    %1297 = vsyncpa [#allocation3], 1
    %s1298 = scalar_lea.sflag [#allocation3], 1
    %1299 = vsyncpa %s1298, 1
    %1300 = vsyncpa [#allocation6], 1
    %s1301 = scalar_lea.sflag [#allocation6], 1
    %1302 = vsyncpa %s1301, 1
    %1303 = vsyncpa [#allocation9], 1
    %1304 = vsyncpa [#allocation4], 1
    %s1305 = scalar_lea.sflag [#allocation4], 1
    %1306 = vsyncpa %s1305, 1

</llo_original>
